<compile_context>
chip_gen: v7x
topology: tpu7x:2x2x1
jax: 0.10.0
libtpu: 0.0.40
codegen_flags: <defaults>
</compile_context>

<pallas_src>
import math
import functools

import jax
import jax.numpy as jnp
from jax.experimental import pallas as pl
from jax.experimental.pallas import tpu as pltpu


def _layernorm(x, w, b, eps):
    mu = jnp.mean(x, axis=-1, keepdims=True)
    var = jnp.mean((x - mu) ** 2, axis=-1, keepdims=True)
    return (x - mu) * jax.lax.rsqrt(var + eps) * w + b


def cross_attention_block_kernel(
    xq_ref, xkv_ref,
    wq_ref, wkv_ref, wo_ref, w1_ref, w2_ref,
    vecs_ref, bkv_ref, b1_ref,
    out_ref,
    *, n_heads, eps, approx_recip,
):
    f32 = jnp.float32
    Bt, Lq, D = xq_ref.shape
    _, Lkv, _ = xkv_ref.shape
    H = n_heads
    hd = D // H
    cdt = wq_ref.dtype                      # matmul compute dtype (bf16 or f32)

    # Residual stream stays in f32; only matmul operands are cast to `cdt`.
    xq = xq_ref[...].reshape(Bt * Lq, D)
    xkv = xkv_ref[...].reshape(Bt * Lkv, D)

    # Packed (1, D) vectors — row order must match prepare_params.
    bq, bo = vecs_ref[0:1, :], vecs_ref[1:2, :]
    ln1w, ln1b = vecs_ref[2:3, :], vecs_ref[3:4, :]
    b2 = vecs_ref[4:5, :]
    ln2w, ln2b = vecs_ref[5:6, :], vecs_ref[6:7, :]

    # ---- projections: two row-slab matmuls.  1/sqrt(hd) is pre-folded into wq/bq;
    # K and V share a single fused (D, 2D) matmul over the kv rows. ----
    q = jnp.dot(xq.astype(cdt), wq_ref[...], preferred_element_type=f32) + bq
    kv = jnp.dot(xkv.astype(cdt), wkv_ref[...], preferred_element_type=f32) + bkv_ref[...]

    q3 = q.reshape(Bt, Lq, D).astype(cdt)          # (Bt, Lq, D)
    kv3 = kv.reshape(Bt, Lkv, 2 * D).astype(cdt)   # (Bt, Lkv, 2D): [:D]=K, [D:]=V

    # ---- attention: per-head loop (H small), each stage batched over Bt via a single
    # leading batch dim; contraction is on head_dim directly (no k.T slab transpose). ----
    head_outs = []
    for h in range(H):
        lo, hi = h * hd, (h + 1) * hd
        s = jnp.einsum('bqd,bkd->bqk', q3[:, :, lo:hi], kv3[:, :, lo:hi],
                       preferred_element_type=f32)           # (Bt, Lq, Lkv) f32
        s = s - jnp.max(s, axis=-1, keepdims=True)
        p = jnp.exp(s)
        p = p * pl.reciprocal(jnp.sum(p, axis=-1, keepdims=True),
                              approx=approx_recip)
        head_outs.append(
            jnp.einsum('bqk,bkd->bqd', p.astype(cdt),
                       kv3[:, :, D + lo:D + hi],
                       preferred_element_type=f32))          # (Bt, Lq, hd) f32
    o = jnp.concatenate(head_outs, axis=-1).reshape(Bt * Lq, D)

    # ---- single K=D output projection over all rows ----
    attn = jnp.dot(o.astype(cdt), wo_ref[...], preferred_element_type=f32) + bo

    # ---- residual + LayerNorm 1 (f32) ----
    x = _layernorm(xq + attn, ln1w, ln1b, eps)

    # ---- FFN: two row-slab matmuls, ReLU in f32 ----
    h1 = jnp.dot(x.astype(cdt), w1_ref[...], preferred_element_type=f32) + b1_ref[...]
    h1 = jnp.maximum(h1, 0.0)
    ffn = jnp.dot(h1.astype(cdt), w2_ref[...], preferred_element_type=f32) + b2

    # ---- residual + LayerNorm 2 ----
    out_ref[...] = _layernorm(x + ffn, ln2w, ln2b, eps).reshape(Bt, Lq, D)


# ---------------------------------------------------------------------------
# One-time parameter preparation (do NOT call per step).
# ---------------------------------------------------------------------------
def prepare_params(params, *, n_heads, compute_dtype=jnp.bfloat16):
    (wq_t, wk_t, wv_t, bq, bk, bv, wo_t, bo,
     ln1w, ln1b, w1_t, b1, w2_t, b2, ln2w, ln2b) = params
    D = wq_t.shape[0]
    hd = D // n_heads
    scale = 1.0 / math.sqrt(hd)

    wq = (wq_t * scale).astype(compute_dtype)                        # (D, D), scale folded
    wkv = jnp.concatenate([wk_t, wv_t], axis=1).astype(compute_dtype)  # (D, 2D)
    wo = wo_t.astype(compute_dtype)                                  # (D, D)
    w1 = w1_t.astype(compute_dtype)                                  # (D, 4D)
    w2 = w2_t.astype(compute_dtype)                                  # (4D, D)

    pad = jnp.zeros((1, D), jnp.float32)
    vecs = jnp.concatenate(
        [bq * scale, bo, ln1w, ln1b, b2, ln2w, ln2b, pad],
        axis=0).astype(jnp.float32)                                  # (8, D)
    bkv = jnp.concatenate([bk, bv], axis=1).astype(jnp.float32)      # (1, 2D)
    return (wq, wkv, wo, w1, w2, vecs, bkv, b1.astype(jnp.float32))


# ---------------------------------------------------------------------------
# VMEM-aware batch-block heuristic.
# ---------------------------------------------------------------------------
def _vmem_bytes_estimate(Bt, Lq, Lkv, D, w_itemsize):
    f32 = 4
    rq, rkv = Bt * Lq, Bt * Lkv
    weights = 12 * D * D * w_itemsize                      # wq + wkv + wo + w1 + w2 (single-buffered)
    small = (8 * D + 2 * D + 4 * D) * f32                  # packed vecs / bkv / b1
    io = 2 * (2 * rq * D + rkv * D) * f32                  # double-buffered xq / out / xkv blocks
    act = (5 * rq * D + 3 * rkv * D + 2 * rq * 4 * D) * f32  # q, o, x, attn, ffn / kv / h1(+slack)
    scores = 3 * Bt * Lq * Lkv * f32                       # live per-head score/prob tensors
    return weights + small + io + act + scores


def _choose_batch_block(B, Lq, Lkv, D, w_itemsize, vmem_cap):
    # Keep >= 2 grid steps when possible so both v7x TensorCores get work.
    max_bt = B if B == 1 else max(1, B // 2)
    budget = int(0.45 * vmem_cap)
    best = 1
    for bt in range(1, max_bt + 1):
        if B % bt:
            continue
        if bt * Lq > 512:                                  # bound in-kernel slab size
            break
        if _vmem_bytes_estimate(bt, Lq, Lkv, D, w_itemsize) > budget:
            break
        best = bt
    return best


# ---------------------------------------------------------------------------
# Wrapper.
# ---------------------------------------------------------------------------
def cross_attention_block(x_q, x_kv, prepared, *, n_heads, eps=1e-5,
                          batch_block=None, interpret=False):
    wq, wkv, wo, w1, w2, vecs, bkv, b1 = prepared
    B, Lq, D = x_q.shape
    _, Lkv, _ = x_kv.shape
    assert D % n_heads == 0

    try:
        vmem_cap = int(pltpu.get_tpu_info().vmem_capacity_bytes)
    except Exception:
        vmem_cap = 64 << 20                                # v7x-safe fallback

    w_itemsize = jnp.dtype(wq.dtype).itemsize
    if batch_block is None:
        batch_block = _choose_batch_block(B, Lq, Lkv, D, w_itemsize, vmem_cap)
    Bt = batch_block
    assert B % Bt == 0
    nb = B // Bt

    est = _vmem_bytes_estimate(Bt, Lq, Lkv, D, w_itemsize)
    vmem_limit = int(min(0.9 * vmem_cap, max(2 * est, 32 << 20)))

    weights = (wq, wkv, wo, w1, w2, vecs, bkv, b1)
    # Grid-invariant operands: constant index_map, single buffer (nothing to prefetch).
    weight_specs = [
        pl.BlockSpec(w.shape, lambda b: (0, 0), pipeline_mode=pl.Buffered(1))
        for w in weights
    ]

    kernel = functools.partial(
        cross_attention_block_kernel, n_heads=n_heads, eps=eps,
        approx_recip=(jnp.dtype(wq.dtype) != jnp.float32))

    return pl.pallas_call(
        kernel,
        out_shape=jax.ShapeDtypeStruct((B, Lq, D), jnp.float32),
        grid=(nb,),
        in_specs=[
            pl.BlockSpec((Bt, Lq, D), lambda b: (b, 0, 0)),
            pl.BlockSpec((Bt, Lkv, D), lambda b: (b, 0, 0)),
        ] + weight_specs,
        out_specs=pl.BlockSpec((Bt, Lq, D), lambda b: (b, 0, 0)),
        compiler_params=pltpu.CompilerParams(
            dimension_semantics=("parallel",),
            vmem_limit_bytes=vmem_limit),
        interpret=interpret,
    )(x_q, x_kv, *weights)


# ---------------------------------------------------------------------------
# Pure-JAX reference matching torch nn.MultiheadAttention semantics.
# ---------------------------------------------------------------------------
def reference(x_q, x_kv, params, *, n_heads, eps=1e-5):
    (wq_t, wk_t, wv_t, bq, bk, bv, wo_t, bo,
     ln1w, ln1b, w1_t, b1, w2_t, b2, ln2w, ln2b) = params
    B, Lq, D = x_q.shape
    Lkv = x_kv.shape[1]
    hd = D // n_heads
    q = (x_q @ wq_t + bq).reshape(B, Lq, n_heads, hd).transpose(0, 2, 1, 3)
    k = (x_kv @ wk_t + bk).reshape(B, Lkv, n_heads, hd).transpose(0, 2, 1, 3)
    v = (x_kv @ wv_t + bv).reshape(B, Lkv, n_heads, hd).transpose(0, 2, 1, 3)
    s = jnp.einsum('bhqd,bhkd->bhqk', q, k) / math.sqrt(hd)
    p = jax.nn.softmax(s, axis=-1)
    o = jnp.einsum('bhqk,bhkd->bhqd', p, v).transpose(0, 2, 1, 3).reshape(B, Lq, D)
    attn = o @ wo_t + bo
    x = _layernorm(x_q + attn, ln1w, ln1b, eps)
    ffn = jnp.maximum(x @ w1_t + b1, 0.0) @ w2_t + b2
    return _layernorm(x + ffn, ln2w, ln2b, eps)


def init_params(key, d_model, n_heads):
    """Deterministic parameter init (shapes match the torch module __init__)."""
    D = d_model
    ks = jax.random.split(key, 12)
    in_proj_w = 0.05 * jax.random.normal(ks[0], (3 * D, D), jnp.float32)
    in_proj_b = 0.02 * jax.random.normal(ks[1], (3 * D,), jnp.float32)
    wq_t = in_proj_w[0 * D:1 * D].T
    wk_t = in_proj_w[1 * D:2 * D].T
    wv_t = in_proj_w[2 * D:3 * D].T
    bq = in_proj_b[0 * D:1 * D].reshape(1, D)
    bk = in_proj_b[1 * D:2 * D].reshape(1, D)
    bv = in_proj_b[2 * D:3 * D].reshape(1, D)
    wo_t = (0.05 * jax.random.normal(ks[2], (D, D), jnp.float32)).T
    bo = (0.02 * jax.random.normal(ks[3], (D,), jnp.float32)).reshape(1, D)
    ln1w = (1.0 + 0.01 * jax.random.normal(ks[4], (D,), jnp.float32)).reshape(1, D)
    ln1b = (0.01 * jax.random.normal(ks[5], (D,), jnp.float32)).reshape(1, D)
    w1_t = (0.05 * jax.random.normal(ks[6], (4 * D, D), jnp.float32)).T    # (D, 4D)
    b1 = (0.02 * jax.random.normal(ks[7], (4 * D,), jnp.float32)).reshape(1, 4 * D)
    w2_t = (0.05 * jax.random.normal(ks[8], (D, 4 * D), jnp.float32)).T    # (4D, D)
    b2 = (0.02 * jax.random.normal(ks[9], (D,), jnp.float32)).reshape(1, D)
    ln2w = (1.0 + 0.01 * jax.random.normal(ks[10], (D,), jnp.float32)).reshape(1, D)
    ln2b = (0.01 * jax.random.normal(ks[11], (D,), jnp.float32)).reshape(1, D)
    return (wq_t, wk_t, wv_t, bq, bk, bv, wo_t, bo,
            ln1w, ln1b, w1_t, b1, w2_t, b2, ln2w, ln2b)


if __name__ == "__main__":
    B, Lq, Lkv, D, H = 2, 8, 16, 32, 4

    key = jax.random.PRNGKey(0)
    k_xq, k_xkv, k_params = jax.random.split(key, 3)
    x_q = jax.random.normal(k_xq, (B, Lq, D), jnp.float32)
    x_kv = jax.random.normal(k_xkv, (B, Lkv, D), jnp.float32)
    params = init_params(k_params, D, H)

    ref = jax.block_until_ready(reference(x_q, x_kv, params, n_heads=H))

    # 1) f32 compute path: tight structural correctness check.
    prep_f32 = prepare_params(params, n_heads=H, compute_dtype=jnp.float32)
    out_f32 = jax.block_until_ready(
        cross_attention_block(x_q, x_kv, prep_f32, n_heads=H))
    assert out_f32.shape == (B, Lq, D)
    err_f32 = float(jnp.max(jnp.abs(out_f32 - ref)))
    assert jnp.allclose(out_f32, ref, rtol=1e-4, atol=1e-4), \
        f"f32 max abs err = {err_f32}"

    # 2) bf16 matmul path (performance path): looser tolerance.
    prep_bf16 = prepare_params(params, n_heads=H, compute_dtype=jnp.bfloat16)
    out_bf16 = jax.block_until_ready(
        cross_attention_block(x_q, x_kv, prep_bf16, n_heads=H))
    assert out_bf16.shape == (B, Lq, D)
    err_bf16 = float(jnp.max(jnp.abs(out_bf16 - ref)))
    assert jnp.allclose(out_bf16, ref, rtol=2e-2, atol=2e-2), \
        f"bf16 max abs err = {err_bf16}"

    print("KERNEL_OK")
</pallas_src>

<mosaic_0001>
module attributes {stable_mosaic.version = 11 : i64} {
  func.func @cross_attention_block_kernel(%arg0: i32, %arg1: memref<1x8x32xf32, #tpu.memory_space<vmem>>, %arg2: memref<1x16x32xf32, #tpu.memory_space<vmem>>, %arg3: memref<32x32xf32, #tpu.memory_space<vmem>>, %arg4: memref<32x64xf32, #tpu.memory_space<vmem>>, %arg5: memref<32x32xf32, #tpu.memory_space<vmem>>, %arg6: memref<32x128xf32, #tpu.memory_space<vmem>>, %arg7: memref<128x32xf32, #tpu.memory_space<vmem>>, %arg8: memref<8x32xf32, #tpu.memory_space<vmem>>, %arg9: memref<1x64xf32, #tpu.memory_space<vmem>>, %arg10: memref<1x128xf32, #tpu.memory_space<vmem>>, %arg11: memref<1x8x32xf32, #tpu.memory_space<vmem>>) attributes {dimension_semantics = [#tpu.dimension_semantics<parallel>], iteration_bounds = array<i64: 2>, scalar_prefetch = 0 : i64, scratch_operands = 0 : i64, tpu.core_type = #tpu.core_type<tc>, window_params = [{transform_indices = @transform_0, window_bounds = array<i64: 1, 8, 32>}, {transform_indices = @transform_1, window_bounds = array<i64: 1, 16, 32>}, {pipeline_mode = #tpu.pipeline_mode<synchronous>, transform_indices = @transform_2, window_bounds = array<i64: 32, 32>}, {pipeline_mode = #tpu.pipeline_mode<synchronous>, transform_indices = @transform_3, window_bounds = array<i64: 32, 64>}, {pipeline_mode = #tpu.pipeline_mode<synchronous>, transform_indices = @transform_4, window_bounds = array<i64: 32, 32>}, {pipeline_mode = #tpu.pipeline_mode<synchronous>, transform_indices = @transform_5, window_bounds = array<i64: 32, 128>}, {pipeline_mode = #tpu.pipeline_mode<synchronous>, transform_indices = @transform_6, window_bounds = array<i64: 128, 32>}, {pipeline_mode = #tpu.pipeline_mode<synchronous>, transform_indices = @transform_7, window_bounds = array<i64: 8, 32>}, {pipeline_mode = #tpu.pipeline_mode<synchronous>, transform_indices = @transform_8, window_bounds = array<i64: 1, 64>}, {pipeline_mode = #tpu.pipeline_mode<synchronous>, transform_indices = @transform_9, window_bounds = array<i64: 1, 128>}, {transform_indices = @transform_10, window_bounds = array<i64: 1, 8, 32>}]} {
    %c0 = arith.constant 0 : index
    %c0_0 = arith.constant 0 : index
    %c0_1 = arith.constant 0 : index
    %0 = vector.load %arg1[%c0, %c0_0, %c0_1] : memref<1x8x32xf32, #tpu.memory_space<vmem>>, vector<1x8x32xf32>
    %1 = vector.shape_cast %0 : vector<1x8x32xf32> to vector<8x32xf32>
    %c0_2 = arith.constant 0 : index
    %c0_3 = arith.constant 0 : index
    %c0_4 = arith.constant 0 : index
    %2 = vector.load %arg2[%c0_2, %c0_3, %c0_4] : memref<1x16x32xf32, #tpu.memory_space<vmem>>, vector<1x16x32xf32>
    %3 = vector.shape_cast %2 : vector<1x16x32xf32> to vector<16x32xf32>
    %c0_5 = arith.constant 0 : index
    %c0_6 = arith.constant 0 : index
    %4 = vector.load %arg8[%c0_5, %c0_6] : memref<8x32xf32, #tpu.memory_space<vmem>>, vector<1x32xf32>
    %c1 = arith.constant 1 : index
    %c0_7 = arith.constant 0 : index
    %5 = vector.load %arg8[%c1, %c0_7] : memref<8x32xf32, #tpu.memory_space<vmem>>, vector<1x32xf32>
    %c2 = arith.constant 2 : index
    %c0_8 = arith.constant 0 : index
    %6 = vector.load %arg8[%c2, %c0_8] : memref<8x32xf32, #tpu.memory_space<vmem>>, vector<1x32xf32>
    %c3 = arith.constant 3 : index
    %c0_9 = arith.constant 0 : index
    %7 = vector.load %arg8[%c3, %c0_9] : memref<8x32xf32, #tpu.memory_space<vmem>>, vector<1x32xf32>
    %c4 = arith.constant 4 : index
    %c0_10 = arith.constant 0 : index
    %8 = vector.load %arg8[%c4, %c0_10] : memref<8x32xf32, #tpu.memory_space<vmem>>, vector<1x32xf32>
    %c5 = arith.constant 5 : index
    %c0_11 = arith.constant 0 : index
    %9 = vector.load %arg8[%c5, %c0_11] : memref<8x32xf32, #tpu.memory_space<vmem>>, vector<1x32xf32>
    %c6 = arith.constant 6 : index
    %c0_12 = arith.constant 0 : index
    %10 = vector.load %arg8[%c6, %c0_12] : memref<8x32xf32, #tpu.memory_space<vmem>>, vector<1x32xf32>
    %c0_13 = arith.constant 0 : index
    %c0_14 = arith.constant 0 : index
    %11 = vector.load %arg3[%c0_13, %c0_14] : memref<32x32xf32, #tpu.memory_space<vmem>>, vector<32x32xf32>
    %cst = arith.constant dense<0.000000e+00> : vector<8x32xf32>
    %12 = tpu.matmul %1, %11, %cst {dimension_numbers = #tpu.dot_dimension_numbers<[1], [0], [0], [1], [0, 0, 1, 1], [], []>} : vector<8x32xf32>, vector<32x32xf32>, vector<8x32xf32> -> vector<8x32xf32>
    %13 = vector.broadcast %4 : vector<1x32xf32> to vector<8x32xf32>
    %14 = arith.addf %12, %13 : vector<8x32xf32>
    %c0_15 = arith.constant 0 : index
    %c0_16 = arith.constant 0 : index
    %15 = vector.load %arg4[%c0_15, %c0_16] : memref<32x64xf32, #tpu.memory_space<vmem>>, vector<32x64xf32>
    %cst_17 = arith.constant dense<0.000000e+00> : vector<16x64xf32>
    %16 = tpu.matmul %3, %15, %cst_17 {dimension_numbers = #tpu.dot_dimension_numbers<[1], [0], [0], [1], [0, 0, 1, 1], [], []>} : vector<16x32xf32>, vector<32x64xf32>, vector<16x64xf32> -> vector<16x64xf32>
    %c0_18 = arith.constant 0 : index
    %c0_19 = arith.constant 0 : index
    %17 = vector.load %arg9[%c0_18, %c0_19] : memref<1x64xf32, #tpu.memory_space<vmem>>, vector<1x64xf32>
    %18 = vector.broadcast %17 : vector<1x64xf32> to vector<16x64xf32>
    %19 = arith.addf %16, %18 : vector<16x64xf32>
    %20 = vector.shape_cast %14 : vector<8x32xf32> to vector<1x8x32xf32>
    %21 = vector.shape_cast %19 : vector<16x64xf32> to vector<1x16x64xf32>
    %22 = vector.extract_strided_slice %20 {offsets = [0, 0, 0], sizes = [1, 8, 8], strides = [1, 1, 1]} : vector<1x8x32xf32> to vector<1x8x8xf32>
    %23 = vector.extract_strided_slice %21 {offsets = [0, 0, 0], sizes = [1, 16, 8], strides = [1, 1, 1]} : vector<1x16x64xf32> to vector<1x16x8xf32>
    "tpu.trace_start"() <{level = 10 : i32, message = "bqd,bkd->bqk"}> : () -> ()
    %cst_20 = arith.constant dense<0.000000e+00> : vector<1x8x16xf32>
    %24 = tpu.matmul %22, %23, %cst_20 {dimension_numbers = #tpu.dot_dimension_numbers<[2], [2], [1], [1], [0, 0, 0, 1, 1, 1], [0], [0]>} : vector<1x8x8xf32>, vector<1x16x8xf32>, vector<1x8x16xf32> -> vector<1x8x16xf32>
    "tpu.trace_stop"() : () -> ()
    %cst_21 = arith.constant dense<0xFF800000> : vector<1x8xf32>
    %25 = vector.multi_reduction <maximumf>, %24, %cst_21 [2] : vector<1x8x16xf32> to vector<1x8xf32>
    %26 = vector.shape_cast %25 : vector<1x8xf32> to vector<1x8x1xf32>
    %27 = vector.broadcast %26 : vector<1x8x1xf32> to vector<1x8x16xf32>
    %28 = arith.subf %24, %27 : vector<1x8x16xf32>
    %29 = math.exp %28 : vector<1x8x16xf32>
    %cst_22 = arith.constant dense<0.000000e+00> : vector<1x8xf32>
    %30 = vector.multi_reduction <add>, %29, %cst_22 [2] : vector<1x8x16xf32> to vector<1x8xf32>
    %31 = vector.shape_cast %30 : vector<1x8xf32> to vector<1x8x1xf32>
    %32 = tpu.reciprocal %31 : vector<1x8x1xf32> -> vector<1x8x1xf32>
    %33 = vector.broadcast %32 : vector<1x8x1xf32> to vector<1x8x16xf32>
    %34 = arith.mulf %29, %33 : vector<1x8x16xf32>
    %35 = vector.extract_strided_slice %21 {offsets = [0, 0, 32], sizes = [1, 16, 8], strides = [1, 1, 1]} : vector<1x16x64xf32> to vector<1x16x8xf32>
    "tpu.trace_start"() <{level = 10 : i32, message = "bqk,bkd->bqd"}> : () -> ()
    %cst_23 = arith.constant dense<0.000000e+00> : vector<1x8x8xf32>
    %36 = tpu.matmul %34, %35, %cst_23 {dimension_numbers = #tpu.dot_dimension_numbers<[2], [1], [1], [2], [0, 0, 0, 1, 1, 2], [0], [0]>} : vector<1x8x16xf32>, vector<1x16x8xf32>, vector<1x8x8xf32> -> vector<1x8x8xf32>
    "tpu.trace_stop"() : () -> ()
    %37 = vector.extract_strided_slice %20 {offsets = [0, 0, 8], sizes = [1, 8, 8], strides = [1, 1, 1]} : vector<1x8x32xf32> to vector<1x8x8xf32>
    %38 = vector.extract_strided_slice %21 {offsets = [0, 0, 8], sizes = [1, 16, 8], strides = [1, 1, 1]} : vector<1x16x64xf32> to vector<1x16x8xf32>
    "tpu.trace_start"() <{level = 10 : i32, message = "bqd,bkd->bqk"}> : () -> ()
    %cst_24 = arith.constant dense<0.000000e+00> : vector<1x8x16xf32>
    %39 = tpu.matmul %37, %38, %cst_24 {dimension_numbers = #tpu.dot_dimension_numbers<[2], [2], [1], [1], [0, 0, 0, 1, 1, 1], [0], [0]>} : vector<1x8x8xf32>, vector<1x16x8xf32>, vector<1x8x16xf32> -> vector<1x8x16xf32>
    "tpu.trace_stop"() : () -> ()
    %cst_25 = arith.constant dense<0xFF800000> : vector<1x8xf32>
    %40 = vector.multi_reduction <maximumf>, %39, %cst_25 [2] : vector<1x8x16xf32> to vector<1x8xf32>
    %41 = vector.shape_cast %40 : vector<1x8xf32> to vector<1x8x1xf32>
    %42 = vector.broadcast %41 : vector<1x8x1xf32> to vector<1x8x16xf32>
    %43 = arith.subf %39, %42 : vector<1x8x16xf32>
    %44 = math.exp %43 : vector<1x8x16xf32>
    %cst_26 = arith.constant dense<0.000000e+00> : vector<1x8xf32>
    %45 = vector.multi_reduction <add>, %44, %cst_26 [2] : vector<1x8x16xf32> to vector<1x8xf32>
    %46 = vector.shape_cast %45 : vector<1x8xf32> to vector<1x8x1xf32>
    %47 = tpu.reciprocal %46 : vector<1x8x1xf32> -> vector<1x8x1xf32>
    %48 = vector.broadcast %47 : vector<1x8x1xf32> to vector<1x8x16xf32>
    %49 = arith.mulf %44, %48 : vector<1x8x16xf32>
    %50 = vector.extract_strided_slice %21 {offsets = [0, 0, 40], sizes = [1, 16, 8], strides = [1, 1, 1]} : vector<1x16x64xf32> to vector<1x16x8xf32>
    "tpu.trace_start"() <{level = 10 : i32, message = "bqk,bkd->bqd"}> : () -> ()
    %cst_27 = arith.constant dense<0.000000e+00> : vector<1x8x8xf32>
    %51 = tpu.matmul %49, %50, %cst_27 {dimension_numbers = #tpu.dot_dimension_numbers<[2], [1], [1], [2], [0, 0, 0, 1, 1, 2], [0], [0]>} : vector<1x8x16xf32>, vector<1x16x8xf32>, vector<1x8x8xf32> -> vector<1x8x8xf32>
    "tpu.trace_stop"() : () -> ()
    %52 = vector.extract_strided_slice %20 {offsets = [0, 0, 16], sizes = [1, 8, 8], strides = [1, 1, 1]} : vector<1x8x32xf32> to vector<1x8x8xf32>
    %53 = vector.extract_strided_slice %21 {offsets = [0, 0, 16], sizes = [1, 16, 8], strides = [1, 1, 1]} : vector<1x16x64xf32> to vector<1x16x8xf32>
    "tpu.trace_start"() <{level = 10 : i32, message = "bqd,bkd->bqk"}> : () -> ()
    %cst_28 = arith.constant dense<0.000000e+00> : vector<1x8x16xf32>
    %54 = tpu.matmul %52, %53, %cst_28 {dimension_numbers = #tpu.dot_dimension_numbers<[2], [2], [1], [1], [0, 0, 0, 1, 1, 1], [0], [0]>} : vector<1x8x8xf32>, vector<1x16x8xf32>, vector<1x8x16xf32> -> vector<1x8x16xf32>
    "tpu.trace_stop"() : () -> ()
    %cst_29 = arith.constant dense<0xFF800000> : vector<1x8xf32>
    %55 = vector.multi_reduction <maximumf>, %54, %cst_29 [2] : vector<1x8x16xf32> to vector<1x8xf32>
    %56 = vector.shape_cast %55 : vector<1x8xf32> to vector<1x8x1xf32>
    %57 = vector.broadcast %56 : vector<1x8x1xf32> to vector<1x8x16xf32>
    %58 = arith.subf %54, %57 : vector<1x8x16xf32>
    %59 = math.exp %58 : vector<1x8x16xf32>
    %cst_30 = arith.constant dense<0.000000e+00> : vector<1x8xf32>
    %60 = vector.multi_reduction <add>, %59, %cst_30 [2] : vector<1x8x16xf32> to vector<1x8xf32>
    %61 = vector.shape_cast %60 : vector<1x8xf32> to vector<1x8x1xf32>
    %62 = tpu.reciprocal %61 : vector<1x8x1xf32> -> vector<1x8x1xf32>
    %63 = vector.broadcast %62 : vector<1x8x1xf32> to vector<1x8x16xf32>
    %64 = arith.mulf %59, %63 : vector<1x8x16xf32>
    %65 = vector.extract_strided_slice %21 {offsets = [0, 0, 48], sizes = [1, 16, 8], strides = [1, 1, 1]} : vector<1x16x64xf32> to vector<1x16x8xf32>
    "tpu.trace_start"() <{level = 10 : i32, message = "bqk,bkd->bqd"}> : () -> ()
    %cst_31 = arith.constant dense<0.000000e+00> : vector<1x8x8xf32>
    %66 = tpu.matmul %64, %65, %cst_31 {dimension_numbers = #tpu.dot_dimension_numbers<[2], [1], [1], [2], [0, 0, 0, 1, 1, 2], [0], [0]>} : vector<1x8x16xf32>, vector<1x16x8xf32>, vector<1x8x8xf32> -> vector<1x8x8xf32>
    "tpu.trace_stop"() : () -> ()
    %67 = vector.extract_strided_slice %20 {offsets = [0, 0, 24], sizes = [1, 8, 8], strides = [1, 1, 1]} : vector<1x8x32xf32> to vector<1x8x8xf32>
    %68 = vector.extract_strided_slice %21 {offsets = [0, 0, 24], sizes = [1, 16, 8], strides = [1, 1, 1]} : vector<1x16x64xf32> to vector<1x16x8xf32>
    "tpu.trace_start"() <{level = 10 : i32, message = "bqd,bkd->bqk"}> : () -> ()
    %cst_32 = arith.constant dense<0.000000e+00> : vector<1x8x16xf32>
    %69 = tpu.matmul %67, %68, %cst_32 {dimension_numbers = #tpu.dot_dimension_numbers<[2], [2], [1], [1], [0, 0, 0, 1, 1, 1], [0], [0]>} : vector<1x8x8xf32>, vector<1x16x8xf32>, vector<1x8x16xf32> -> vector<1x8x16xf32>
    "tpu.trace_stop"() : () -> ()
    %cst_33 = arith.constant dense<0xFF800000> : vector<1x8xf32>
    %70 = vector.multi_reduction <maximumf>, %69, %cst_33 [2] : vector<1x8x16xf32> to vector<1x8xf32>
    %71 = vector.shape_cast %70 : vector<1x8xf32> to vector<1x8x1xf32>
    %72 = vector.broadcast %71 : vector<1x8x1xf32> to vector<1x8x16xf32>
    %73 = arith.subf %69, %72 : vector<1x8x16xf32>
    %74 = math.exp %73 : vector<1x8x16xf32>
    %cst_34 = arith.constant dense<0.000000e+00> : vector<1x8xf32>
    %75 = vector.multi_reduction <add>, %74, %cst_34 [2] : vector<1x8x16xf32> to vector<1x8xf32>
    %76 = vector.shape_cast %75 : vector<1x8xf32> to vector<1x8x1xf32>
    %77 = tpu.reciprocal %76 : vector<1x8x1xf32> -> vector<1x8x1xf32>
    %78 = vector.broadcast %77 : vector<1x8x1xf32> to vector<1x8x16xf32>
    %79 = arith.mulf %74, %78 : vector<1x8x16xf32>
    %80 = vector.extract_strided_slice %21 {offsets = [0, 0, 56], sizes = [1, 16, 8], strides = [1, 1, 1]} : vector<1x16x64xf32> to vector<1x16x8xf32>
    "tpu.trace_start"() <{level = 10 : i32, message = "bqk,bkd->bqd"}> : () -> ()
    %cst_35 = arith.constant dense<0.000000e+00> : vector<1x8x8xf32>
    %81 = tpu.matmul %79, %80, %cst_35 {dimension_numbers = #tpu.dot_dimension_numbers<[2], [1], [1], [2], [0, 0, 0, 1, 1, 2], [0], [0]>} : vector<1x8x16xf32>, vector<1x16x8xf32>, vector<1x8x8xf32> -> vector<1x8x8xf32>
    "tpu.trace_stop"() : () -> ()
    %82 = tpu.concatenate %36, %51, %66, %81 in 2 : vector<1x8x8xf32>, vector<1x8x8xf32>, vector<1x8x8xf32>, vector<1x8x8xf32> -> vector<1x8x32xf32>
    %83 = vector.shape_cast %82 : vector<1x8x32xf32> to vector<8x32xf32>
    %c0_36 = arith.constant 0 : index
    %c0_37 = arith.constant 0 : index
    %84 = vector.load %arg5[%c0_36, %c0_37] : memref<32x32xf32, #tpu.memory_space<vmem>>, vector<32x32xf32>
    %cst_38 = arith.constant dense<0.000000e+00> : vector<8x32xf32>
    %85 = tpu.matmul %83, %84, %cst_38 {dimension_numbers = #tpu.dot_dimension_numbers<[1], [0], [0], [1], [0, 0, 1, 1], [], []>} : vector<8x32xf32>, vector<32x32xf32>, vector<8x32xf32> -> vector<8x32xf32>
    %86 = vector.broadcast %5 : vector<1x32xf32> to vector<8x32xf32>
    %87 = arith.addf %85, %86 : vector<8x32xf32>
    %88 = arith.addf %1, %87 : vector<8x32xf32>
    %cst_39 = arith.constant dense<0.000000e+00> : vector<8xf32>
    %89 = vector.multi_reduction <add>, %88, %cst_39 [1] : vector<8x32xf32> to vector<8xf32>
    %90 = vector.shape_cast %89 : vector<8xf32> to vector<8x1xf32>
    %cst_40 = arith.constant 3.200000e+01 : f32
    %91 = vector.broadcast %cst_40 : f32 to vector<8x1xf32>
    %92 = arith.divf %90, %91 : vector<8x1xf32>
    %93 = vector.broadcast %92 : vector<8x1xf32> to vector<8x32xf32>
    %94 = arith.subf %88, %93 : vector<8x32xf32>
    %95 = arith.mulf %94, %94 : vector<8x32xf32>
    %cst_41 = arith.constant dense<0.000000e+00> : vector<8xf32>
    %96 = vector.multi_reduction <add>, %95, %cst_41 [1] : vector<8x32xf32> to vector<8xf32>
    %97 = vector.shape_cast %96 : vector<8xf32> to vector<8x1xf32>
    %cst_42 = arith.constant 3.200000e+01 : f32
    %98 = vector.broadcast %cst_42 : f32 to vector<8x1xf32>
    %99 = arith.divf %97, %98 : vector<8x1xf32>
    %100 = vector.broadcast %92 : vector<8x1xf32> to vector<8x32xf32>
    %101 = arith.subf %88, %100 : vector<8x32xf32>
    %cst_43 = arith.constant 9.99999974E-6 : f32
    %102 = vector.broadcast %cst_43 : f32 to vector<8x1xf32>
    %103 = arith.addf %99, %102 : vector<8x1xf32>
    %104 = math.rsqrt %103 : vector<8x1xf32>
    %105 = vector.broadcast %104 : vector<8x1xf32> to vector<8x32xf32>
    %106 = arith.mulf %101, %105 : vector<8x32xf32>
    %107 = vector.broadcast %6 : vector<1x32xf32> to vector<8x32xf32>
    %108 = arith.mulf %106, %107 : vector<8x32xf32>
    %109 = vector.broadcast %7 : vector<1x32xf32> to vector<8x32xf32>
    %110 = arith.addf %108, %109 : vector<8x32xf32>
    %c0_44 = arith.constant 0 : index
    %c0_45 = arith.constant 0 : index
    %111 = vector.load %arg6[%c0_44, %c0_45] : memref<32x128xf32, #tpu.memory_space<vmem>>, vector<32x128xf32>
    %cst_46 = arith.constant dense<0.000000e+00> : vector<8x128xf32>
    %112 = tpu.matmul %110, %111, %cst_46 {dimension_numbers = #tpu.dot_dimension_numbers<[1], [0], [0], [1], [0, 0, 1, 1], [], []>} : vector<8x32xf32>, vector<32x128xf32>, vector<8x128xf32> -> vector<8x128xf32>
    %c0_47 = arith.constant 0 : index
    %c0_48 = arith.constant 0 : index
    %113 = vector.load %arg10[%c0_47, %c0_48] : memref<1x128xf32, #tpu.memory_space<vmem>>, vector<1x128xf32>
    %114 = vector.broadcast %113 : vector<1x128xf32> to vector<8x128xf32>
    %115 = arith.addf %112, %114 : vector<8x128xf32>
    %cst_49 = arith.constant 0.000000e+00 : f32
    %116 = vector.broadcast %cst_49 : f32 to vector<8x128xf32>
    %117 = arith.maximumf %115, %116 : vector<8x128xf32>
    %c0_50 = arith.constant 0 : index
    %c0_51 = arith.constant 0 : index
    %118 = vector.load %arg7[%c0_50, %c0_51] : memref<128x32xf32, #tpu.memory_space<vmem>>, vector<128x32xf32>
    %cst_52 = arith.constant dense<0.000000e+00> : vector<8x32xf32>
    %119 = tpu.matmul %117, %118, %cst_52 {dimension_numbers = #tpu.dot_dimension_numbers<[1], [0], [0], [1], [0, 0, 1, 1], [], []>} : vector<8x128xf32>, vector<128x32xf32>, vector<8x32xf32> -> vector<8x32xf32>
    %120 = vector.broadcast %8 : vector<1x32xf32> to vector<8x32xf32>
    %121 = arith.addf %119, %120 : vector<8x32xf32>
    %122 = arith.addf %110, %121 : vector<8x32xf32>
    %cst_53 = arith.constant dense<0.000000e+00> : vector<8xf32>
    %123 = vector.multi_reduction <add>, %122, %cst_53 [1] : vector<8x32xf32> to vector<8xf32>
    %124 = vector.shape_cast %123 : vector<8xf32> to vector<8x1xf32>
    %cst_54 = arith.constant 3.200000e+01 : f32
    %125 = vector.broadcast %cst_54 : f32 to vector<8x1xf32>
    %126 = arith.divf %124, %125 : vector<8x1xf32>
    %127 = vector.broadcast %126 : vector<8x1xf32> to vector<8x32xf32>
    %128 = arith.subf %122, %127 : vector<8x32xf32>
    %129 = arith.mulf %128, %128 : vector<8x32xf32>
    %cst_55 = arith.constant dense<0.000000e+00> : vector<8xf32>
    %130 = vector.multi_reduction <add>, %129, %cst_55 [1] : vector<8x32xf32> to vector<8xf32>
    %131 = vector.shape_cast %130 : vector<8xf32> to vector<8x1xf32>
    %cst_56 = arith.constant 3.200000e+01 : f32
    %132 = vector.broadcast %cst_56 : f32 to vector<8x1xf32>
    %133 = arith.divf %131, %132 : vector<8x1xf32>
    %134 = vector.broadcast %126 : vector<8x1xf32> to vector<8x32xf32>
    %135 = arith.subf %122, %134 : vector<8x32xf32>
    %cst_57 = arith.constant 9.99999974E-6 : f32
    %136 = vector.broadcast %cst_57 : f32 to vector<8x1xf32>
    %137 = arith.addf %133, %136 : vector<8x1xf32>
    %138 = math.rsqrt %137 : vector<8x1xf32>
    %139 = vector.broadcast %138 : vector<8x1xf32> to vector<8x32xf32>
    %140 = arith.mulf %135, %139 : vector<8x32xf32>
    %141 = vector.broadcast %9 : vector<1x32xf32> to vector<8x32xf32>
    %142 = arith.mulf %140, %141 : vector<8x32xf32>
    %143 = vector.broadcast %10 : vector<1x32xf32> to vector<8x32xf32>
    %144 = arith.addf %142, %143 : vector<8x32xf32>
    %145 = vector.shape_cast %144 : vector<8x32xf32> to vector<1x8x32xf32>
    %c0_58 = arith.constant 0 : index
    %c0_59 = arith.constant 0 : index
    %c0_60 = arith.constant 0 : index
    %146 = vector.load %arg11[%c0_58, %c0_59, %c0_60] : memref<1x8x32xf32, #tpu.memory_space<vmem>>, vector<1x8x32xf32>
    tpu.vector_store %arg11[%c0_58, %c0_59, %c0_60], %145 {strides = array<i32>} : memref<1x8x32xf32, #tpu.memory_space<vmem>>, vector<1x8x32xf32>,
    return
  }
  func.func @transform_0(%arg0: i32) -> (i32, i32, i32) {
    %c0_i32 = arith.constant 0 : i32
    %c0_i32_0 = arith.constant 0 : i32
    %c0_i32_1 = arith.constant 0 : i32
    return %arg0, %c0_i32, %c0_i32_0 : i32, i32, i32
  }
  func.func @transform_1(%arg0: i32) -> (i32, i32, i32) {
    %c0_i32 = arith.constant 0 : i32
    %c0_i32_0 = arith.constant 0 : i32
    %c0_i32_1 = arith.constant 0 : i32
    return %arg0, %c0_i32, %c0_i32_0 : i32, i32, i32
  }
  func.func @transform_2(%arg0: i32) -> (i32, i32) {
    %c0_i32 = arith.constant 0 : i32
    %c0_i32_0 = arith.constant 0 : i32
    %c0_i32_1 = arith.constant 0 : i32
    return %c0_i32, %c0_i32_0 : i32, i32
  }
  func.func @transform_3(%arg0: i32) -> (i32, i32) {
    %c0_i32 = arith.constant 0 : i32
    %c0_i32_0 = arith.constant 0 : i32
    %c0_i32_1 = arith.constant 0 : i32
    return %c0_i32, %c0_i32_0 : i32, i32
  }
  func.func @transform_4(%arg0: i32) -> (i32, i32) {
    %c0_i32 = arith.constant 0 : i32
    %c0_i32_0 = arith.constant 0 : i32
    %c0_i32_1 = arith.constant 0 : i32
    return %c0_i32, %c0_i32_0 : i32, i32
  }
  func.func @transform_5(%arg0: i32) -> (i32, i32) {
    %c0_i32 = arith.constant 0 : i32
    %c0_i32_0 = arith.constant 0 : i32
    %c0_i32_1 = arith.constant 0 : i32
    return %c0_i32, %c0_i32_0 : i32, i32
  }
  func.func @transform_6(%arg0: i32) -> (i32, i32) {
    %c0_i32 = arith.constant 0 : i32
    %c0_i32_0 = arith.constant 0 : i32
    %c0_i32_1 = arith.constant 0 : i32
    return %c0_i32, %c0_i32_0 : i32, i32
  }
  func.func @transform_7(%arg0: i32) -> (i32, i32) {
    %c0_i32 = arith.constant 0 : i32
    %c0_i32_0 = arith.constant 0 : i32
    %c0_i32_1 = arith.constant 0 : i32
    return %c0_i32, %c0_i32_0 : i32, i32
  }
  func.func @transform_8(%arg0: i32) -> (i32, i32) {
    %c0_i32 = arith.constant 0 : i32
    %c0_i32_0 = arith.constant 0 : i32
    %c0_i32_1 = arith.constant 0 : i32
    return %c0_i32, %c0_i32_0 : i32, i32
  }
  func.func @transform_9(%arg0: i32) -> (i32, i32) {
    %c0_i32 = arith.constant 0 : i32
    %c0_i32_0 = arith.constant 0 : i32
    %c0_i32_1 = arith.constant 0 : i32
    return %c0_i32, %c0_i32_0 : i32, i32
  }
  func.func @transform_10(%arg0: i32) -> (i32, i32, i32) {
    %c0_i32 = arith.constant 0 : i32
    %c0_i32_0 = arith.constant 0 : i32
    %c0_i32_1 = arith.constant 0 : i32
    return %arg0, %c0_i32, %c0_i32_0 : i32, i32, i32
  }
}

</mosaic_0001>

<llo_original>
// kernel: tpu_custom_call.1
$region0: #{tpu_custom_call.1}
  #allocation0 [shape = 'u32[]', space=smem, size = 0x4, offset = 0x4, fixed_abs, tag = 'smem constant byte address 0x4 - core index']
  #allocation1 [shape = 'u32[144,128]{1,0:T(1,128)}', space=vmem, size = 0x12000, scoped, tag = 'internal scratch']
  %s0 = inlined_call_operand.hbm [shape: f32[2,8,32], index: 0, kind: input, shape index: {}]
  %s1 = inlined_call_operand.vmem [shape: f32[2,16,32], index: 1, kind: input, shape index: {}]
  %s2 = inlined_call_operand.vmem [shape: f32[32,32], index: 2, kind: input, shape index: {}]
  %s3 = inlined_call_operand.vmem [shape: f32[32,64], index: 3, kind: input, shape index: {}]
  %s4 = inlined_call_operand.vmem [shape: f32[32,32], index: 4, kind: input, shape index: {}]
  %s5 = inlined_call_operand.vmem [shape: f32[32,128], index: 5, kind: input, shape index: {}]
  %s6 = inlined_call_operand.vmem [shape: f32[128,32], index: 6, kind: input, shape index: {}]
  %s7 = inlined_call_operand.vmem [shape: f32[8,32], index: 7, kind: input, shape index: {}]
  %s8 = inlined_call_operand.vmem [shape: f32[1,64], index: 8, kind: input, shape index: {}]
  %s9 = inlined_call_operand.vmem [shape: f32[1,128], index: 9, kind: input, shape index: {}]
  %s10 = inlined_call_operand.hbm [shape: f32[2,8,32], index: 10, kind: output, shape index: {}]
  %s11 = sld [smem:[#allocation0]]
  $region77: #{tpu_custom_call.1} parent=0
    _
  %s13 = ssub.s32 1, %s11
  %s14 = scalar_select 0, %s13, %s11
  $region1: #{tpu_custom_call.1} parent=0
    #allocation2 [shape = 'u8[8192]{0}', space=vmem, size = 0x2000, scoped, tag = 'input window, operand 0']
    #allocation3 [shape = 's32[2]{0}', space=sflag, size = 0x8, scoped, tag = 'scoped memory for tpu_custom_call.1']
    #allocation4 [shape = 's32[2]{0}', space=sflag, size = 0x8, scoped, tag = 'scoped memory for tpu_custom_call.1']
    #allocation5 [shape = 'u8[8192]{0}', space=vmem, size = 0x2000, scoped, tag = 'output window, operand 0']
    %15 = vsyncpa [#allocation3], 0
    %s16 = scalar_lea.sflag [#allocation3], 1
    %17 = vsyncpa %s16, 0
    %18 = vsyncpa [#allocation4], 0
    %s19 = scalar_lea.sflag [#allocation4], 1
    %20 = vsyncpa %s19, 0
    loop: start=0, step=1, limit=4
    $region2: #{tpu_custom_call.1} parent=1 // loop_pre_header
      _
    $region3: #{tpu_custom_call.1} parent=1 // loop_header
      %s22 = sphi 0, %s26
      %p23 = scmp.ge.s32.totalorder %s22, 4
      %s32 = sphi 0, %s34
      %s35 = sphi 0, %s32
      %s36 = sphi 0, %s35
      %s52 = sphi 0, %s36
      %s58 = sphi 0, %s60
      %s61 = sphi 0, %s58
      %s62 = sphi 0, %s61
      %s78 = sphi 0, %s62
      %s82 = sphi 0, %s82
      %s84 = sphi 0, %s82
      %s85 = sphi 0, %s84
      %s99 = sphi 0, %s85
      %s103 = sphi 0, %s103
      %s105 = sphi 0, %s103
      %s106 = sphi 0, %s105
      %s120 = sphi 0, %s106
      %s124 = sphi 0, %s124
      %s126 = sphi 0, %s124
      %s127 = sphi 0, %s126
      %s141 = sphi 0, %s127
      %s145 = sphi 0, %s145
      %s147 = sphi 0, %s145
      %s148 = sphi 0, %s147
      %s162 = sphi 0, %s148
      %s166 = sphi 0, %s166
      %s168 = sphi 0, %s166
      %s169 = sphi 0, %s168
      %s183 = sphi 0, %s169
      %s187 = sphi 0, %s187
      %s189 = sphi 0, %s187
      %s190 = sphi 0, %s189
      %s204 = sphi 0, %s190
      %s208 = sphi 0, %s208
      %s210 = sphi 0, %s208
      %s211 = sphi 0, %s210
      %s225 = sphi 0, %s211
      %s229 = sphi 0, %s229
      %s231 = sphi 0, %s229
      %s232 = sphi 0, %s231
      %s246 = sphi 0, %s232
      %s252 = sphi 0, %s254
      %s255 = sphi 0, %s252
      %s256 = sphi 0, %s255
      %s272 = sphi 0, %s256
    $region4: #{tpu_custom_call.1} parent=1 // loop_header_branch
      %25 = sbr.rel (%p23) target = $region8
    $region5: #{tpu_custom_call.1} parent=1 // loop_body
      %s27 = ssub.s32 %s22, 1
      %s28 = ssub.s32 %s22, 2
      %s29 = sadd.s32 %s22, 1
      %s30 = ssub.s32 %s22, %s29
      %p31 = scmp.eq.s32.totalorder %s30, 0
      %s33 = sadd.s32 %s32, 1
      %s34 = scalar_select %p31, %s32, %s33
      %p37 = pneg %p31
      %p38 = scmp.eq.s32.totalorder %s22, 1
      %p39 = por %p37, %p38
      %p40 = scmp.ne.s32.totalorder %s32, %s35
      %p41 = scmp.eq.s32.totalorder %s22, 0
      %p42 = por %p40, %p41
      %p43 = scmp.ne.s32.totalorder %s32, %s35
      %p44 = scmp.eq.s32.totalorder %s27, 1
      %p45 = por %p43, %p44
      %p46 = scmp.ne.s32.totalorder %s35, %s36
      %p47 = scmp.eq.s32.totalorder %s27, 0
      %p48 = por %p46, %p47
      %p49 = scmp.ne.s32.totalorder %s35, %s36
      %p50 = scmp.eq.s32.totalorder %s28, 1
      %p51 = por %p49, %p50
      %p53 = scmp.ne.s32.totalorder %s36, %s52
      %p54 = scmp.eq.s32.totalorder %s28, 0
      %p55 = por %p53, %p54
      %s56 = ssub.s32 %s22, %s29
      %p57 = scmp.eq.s32.totalorder %s56, 0
      %s59 = sadd.s32 %s58, 1
      %s60 = scalar_select %p57, %s58, %s59
      %p63 = pneg %p57
      %p64 = scmp.eq.s32.totalorder %s22, 1
      %p65 = por %p63, %p64
      %p66 = scmp.ne.s32.totalorder %s58, %s61
      %p67 = scmp.eq.s32.totalorder %s22, 0
      %p68 = por %p66, %p67
      %p69 = scmp.ne.s32.totalorder %s58, %s61
      %p70 = scmp.eq.s32.totalorder %s27, 1
      %p71 = por %p69, %p70
      %p72 = scmp.ne.s32.totalorder %s61, %s62
      %p73 = scmp.eq.s32.totalorder %s27, 0
      %p74 = por %p72, %p73
      %p75 = scmp.ne.s32.totalorder %s61, %s62
      %p76 = scmp.eq.s32.totalorder %s28, 1
      %p77 = por %p75, %p76
      %p79 = scmp.ne.s32.totalorder %s62, %s78
      %p80 = scmp.eq.s32.totalorder %s28, 0
      %p81 = por %p79, %p80
      %s83 = sadd.s32 %s82, 1
      %p86 = scmp.eq.s32.totalorder %s22, 1
      %p87 = scmp.ne.s32.totalorder %s82, %s84
      %p88 = scmp.eq.s32.totalorder %s22, 0
      %p89 = por %p87, %p88
      %p90 = scmp.ne.s32.totalorder %s82, %s84
      %p91 = scmp.eq.s32.totalorder %s27, 1
      %p92 = por %p90, %p91
      %p93 = scmp.ne.s32.totalorder %s84, %s85
      %p94 = scmp.eq.s32.totalorder %s27, 0
      %p95 = por %p93, %p94
      %p96 = scmp.ne.s32.totalorder %s84, %s85
      %p97 = scmp.eq.s32.totalorder %s28, 1
      %p98 = por %p96, %p97
      %p100 = scmp.ne.s32.totalorder %s85, %s99
      %p101 = scmp.eq.s32.totalorder %s28, 0
      %p102 = por %p100, %p101
      %s104 = sadd.s32 %s103, 1
      %p107 = scmp.eq.s32.totalorder %s22, 1
      %p108 = scmp.ne.s32.totalorder %s103, %s105
      %p109 = scmp.eq.s32.totalorder %s22, 0
      %p110 = por %p108, %p109
      %p111 = scmp.ne.s32.totalorder %s103, %s105
      %p112 = scmp.eq.s32.totalorder %s27, 1
      %p113 = por %p111, %p112
      %p114 = scmp.ne.s32.totalorder %s105, %s106
      %p115 = scmp.eq.s32.totalorder %s27, 0
      %p116 = por %p114, %p115
      %p117 = scmp.ne.s32.totalorder %s105, %s106
      %p118 = scmp.eq.s32.totalorder %s28, 1
      %p119 = por %p117, %p118
      %p121 = scmp.ne.s32.totalorder %s106, %s120
      %p122 = scmp.eq.s32.totalorder %s28, 0
      %p123 = por %p121, %p122
      %s125 = sadd.s32 %s124, 1
      %p128 = scmp.eq.s32.totalorder %s22, 1
      %p129 = scmp.ne.s32.totalorder %s124, %s126
      %p130 = scmp.eq.s32.totalorder %s22, 0
      %p131 = por %p129, %p130
      %p132 = scmp.ne.s32.totalorder %s124, %s126
      %p133 = scmp.eq.s32.totalorder %s27, 1
      %p134 = por %p132, %p133
      %p135 = scmp.ne.s32.totalorder %s126, %s127
      %p136 = scmp.eq.s32.totalorder %s27, 0
      %p137 = por %p135, %p136
      %p138 = scmp.ne.s32.totalorder %s126, %s127
      %p139 = scmp.eq.s32.totalorder %s28, 1
      %p140 = por %p138, %p139
      %p142 = scmp.ne.s32.totalorder %s127, %s141
      %p143 = scmp.eq.s32.totalorder %s28, 0
      %p144 = por %p142, %p143
      %s146 = sadd.s32 %s145, 1
      %p149 = scmp.eq.s32.totalorder %s22, 1
      %p150 = scmp.ne.s32.totalorder %s145, %s147
      %p151 = scmp.eq.s32.totalorder %s22, 0
      %p152 = por %p150, %p151
      %p153 = scmp.ne.s32.totalorder %s145, %s147
      %p154 = scmp.eq.s32.totalorder %s27, 1
      %p155 = por %p153, %p154
      %p156 = scmp.ne.s32.totalorder %s147, %s148
      %p157 = scmp.eq.s32.totalorder %s27, 0
      %p158 = por %p156, %p157
      %p159 = scmp.ne.s32.totalorder %s147, %s148
      %p160 = scmp.eq.s32.totalorder %s28, 1
      %p161 = por %p159, %p160
      %p163 = scmp.ne.s32.totalorder %s148, %s162
      %p164 = scmp.eq.s32.totalorder %s28, 0
      %p165 = por %p163, %p164
      %s167 = sadd.s32 %s166, 1
      %p170 = scmp.eq.s32.totalorder %s22, 1
      %p171 = scmp.ne.s32.totalorder %s166, %s168
      %p172 = scmp.eq.s32.totalorder %s22, 0
      %p173 = por %p171, %p172
      %p174 = scmp.ne.s32.totalorder %s166, %s168
      %p175 = scmp.eq.s32.totalorder %s27, 1
      %p176 = por %p174, %p175
      %p177 = scmp.ne.s32.totalorder %s168, %s169
      %p178 = scmp.eq.s32.totalorder %s27, 0
      %p179 = por %p177, %p178
      %p180 = scmp.ne.s32.totalorder %s168, %s169
      %p181 = scmp.eq.s32.totalorder %s28, 1
      %p182 = por %p180, %p181
      %p184 = scmp.ne.s32.totalorder %s169, %s183
      %p185 = scmp.eq.s32.totalorder %s28, 0
      %p186 = por %p184, %p185
      %s188 = sadd.s32 %s187, 1
      %p191 = scmp.eq.s32.totalorder %s22, 1
      %p192 = scmp.ne.s32.totalorder %s187, %s189
      %p193 = scmp.eq.s32.totalorder %s22, 0
      %p194 = por %p192, %p193
      %p195 = scmp.ne.s32.totalorder %s187, %s189
      %p196 = scmp.eq.s32.totalorder %s27, 1
      %p197 = por %p195, %p196
      %p198 = scmp.ne.s32.totalorder %s189, %s190
      %p199 = scmp.eq.s32.totalorder %s27, 0
      %p200 = por %p198, %p199
      %p201 = scmp.ne.s32.totalorder %s189, %s190
      %p202 = scmp.eq.s32.totalorder %s28, 1
      %p203 = por %p201, %p202
      %p205 = scmp.ne.s32.totalorder %s190, %s204
      %p206 = scmp.eq.s32.totalorder %s28, 0
      %p207 = por %p205, %p206
      %s209 = sadd.s32 %s208, 1
      %p212 = scmp.eq.s32.totalorder %s22, 1
      %p213 = scmp.ne.s32.totalorder %s208, %s210
      %p214 = scmp.eq.s32.totalorder %s22, 0
      %p215 = por %p213, %p214
      %p216 = scmp.ne.s32.totalorder %s208, %s210
      %p217 = scmp.eq.s32.totalorder %s27, 1
      %p218 = por %p216, %p217
      %p219 = scmp.ne.s32.totalorder %s210, %s211
      %p220 = scmp.eq.s32.totalorder %s27, 0
      %p221 = por %p219, %p220
      %p222 = scmp.ne.s32.totalorder %s210, %s211
      %p223 = scmp.eq.s32.totalorder %s28, 1
      %p224 = por %p222, %p223
      %p226 = scmp.ne.s32.totalorder %s211, %s225
      %p227 = scmp.eq.s32.totalorder %s28, 0
      %p228 = por %p226, %p227
      %s230 = sadd.s32 %s229, 1
      %p233 = scmp.eq.s32.totalorder %s22, 1
      %p234 = scmp.ne.s32.totalorder %s229, %s231
      %p235 = scmp.eq.s32.totalorder %s22, 0
      %p236 = por %p234, %p235
      %p237 = scmp.ne.s32.totalorder %s229, %s231
      %p238 = scmp.eq.s32.totalorder %s27, 1
      %p239 = por %p237, %p238
      %p240 = scmp.ne.s32.totalorder %s231, %s232
      %p241 = scmp.eq.s32.totalorder %s27, 0
      %p242 = por %p240, %p241
      %p243 = scmp.ne.s32.totalorder %s231, %s232
      %p244 = scmp.eq.s32.totalorder %s28, 1
      %p245 = por %p243, %p244
      %p247 = scmp.ne.s32.totalorder %s232, %s246
      %p248 = scmp.eq.s32.totalorder %s28, 0
      %p249 = por %p247, %p248
      %s250 = ssub.s32 %s22, %s29
      %p251 = scmp.eq.s32.totalorder %s250, 0
      %s253 = sadd.s32 %s252, 1
      %s254 = scalar_select %p251, %s252, %s253
      %p257 = pneg %p251
      %p258 = scmp.eq.s32.totalorder %s22, 1
      %p259 = por %p257, %p258
      %p260 = scmp.ne.s32.totalorder %s252, %s255
      %p261 = scmp.eq.s32.totalorder %s22, 0
      %p262 = por %p260, %p261
      %p263 = scmp.ne.s32.totalorder %s252, %s255
      %p264 = scmp.eq.s32.totalorder %s27, 1
      %p265 = por %p263, %p264
      %p266 = scmp.ne.s32.totalorder %s255, %s256
      %p267 = scmp.eq.s32.totalorder %s27, 0
      %p268 = por %p266, %p267
      %p269 = scmp.ne.s32.totalorder %s255, %s256
      %p270 = scmp.eq.s32.totalorder %s28, 1
      %p271 = por %p269, %p270
      %p273 = scmp.ne.s32.totalorder %s256, %s272
      %p274 = scmp.eq.s32.totalorder %s28, 0
      %p275 = por %p273, %p274
      %p276 = scmp.le.s32.totalorder 1, %s22
      %p277 = scmp.lt.s32.totalorder %s22, 3
      %p278 = pnand %p276, %p277
      %p279 = pneg %p278
      // Predicated region
      $region9: #{tpu_custom_call.1} parent=5 // pred_check
        _
      $region10: #{tpu_custom_call.1} parent=5 // pred_check_branch
        %281 = sbr.rel (%p278) target = $region12
      $region11: #{tpu_custom_call.1} parent=5 // pred_region
        %s282 = ssub.s32 %s22, 1
        // Predicated region
        $region13: #{tpu_custom_call.1} parent=11 // pred_check
          %p283 = pneg %p95
        $region14: #{tpu_custom_call.1} parent=11 // pred_check_branch
          %285 = sbr.rel (%p283) target = $region16
        $region15: #{tpu_custom_call.1} parent=11 // pred_region
          _
        $region16: #{tpu_custom_call.1} parent=11 // pred_fallthru
          _
        // Predicated region
        $region17: #{tpu_custom_call.1} parent=11 // pred_check
          %p286 = pneg %p116
        $region18: #{tpu_custom_call.1} parent=11 // pred_check_branch
          %288 = sbr.rel (%p286) target = $region20
        $region19: #{tpu_custom_call.1} parent=11 // pred_region
          _
        $region20: #{tpu_custom_call.1} parent=11 // pred_fallthru
          _
        // Predicated region
        $region21: #{tpu_custom_call.1} parent=11 // pred_check
          %p289 = pneg %p137
        $region22: #{tpu_custom_call.1} parent=11 // pred_check_branch
          %291 = sbr.rel (%p289) target = $region24
        $region23: #{tpu_custom_call.1} parent=11 // pred_region
          _
        $region24: #{tpu_custom_call.1} parent=11 // pred_fallthru
          _
        // Predicated region
        $region25: #{tpu_custom_call.1} parent=11 // pred_check
          %p292 = pneg %p158
        $region26: #{tpu_custom_call.1} parent=11 // pred_check_branch
          %294 = sbr.rel (%p292) target = $region28
        $region27: #{tpu_custom_call.1} parent=11 // pred_region
          _
        $region28: #{tpu_custom_call.1} parent=11 // pred_fallthru
          _
        // Predicated region
        $region29: #{tpu_custom_call.1} parent=11 // pred_check
          %p295 = pneg %p179
        $region30: #{tpu_custom_call.1} parent=11 // pred_check_branch
          %297 = sbr.rel (%p295) target = $region32
        $region31: #{tpu_custom_call.1} parent=11 // pred_region
          _
        $region32: #{tpu_custom_call.1} parent=11 // pred_fallthru
          _
        // Predicated region
        $region33: #{tpu_custom_call.1} parent=11 // pred_check
          %p298 = pneg %p200
        $region34: #{tpu_custom_call.1} parent=11 // pred_check_branch
          %300 = sbr.rel (%p298) target = $region36
        $region35: #{tpu_custom_call.1} parent=11 // pred_region
          _
        $region36: #{tpu_custom_call.1} parent=11 // pred_fallthru
          _
        // Predicated region
        $region37: #{tpu_custom_call.1} parent=11 // pred_check
          %p301 = pneg %p221
        $region38: #{tpu_custom_call.1} parent=11 // pred_check_branch
          %303 = sbr.rel (%p301) target = $region40
        $region39: #{tpu_custom_call.1} parent=11 // pred_region
          _
        $region40: #{tpu_custom_call.1} parent=11 // pred_fallthru
          _
        // Predicated region
        $region41: #{tpu_custom_call.1} parent=11 // pred_check
          %p304 = pneg %p242
        $region42: #{tpu_custom_call.1} parent=11 // pred_check_branch
          %306 = sbr.rel (%p304) target = $region44
        $region43: #{tpu_custom_call.1} parent=11 // pred_region
          _
        $region44: #{tpu_custom_call.1} parent=11 // pred_fallthru
          _
      $region12: #{tpu_custom_call.1} parent=5 // pred_fallthru
        _
      %p307 = scmp.lt.s32.totalorder %s22, 2
      // Predicated region
      $region45: #{tpu_custom_call.1} parent=5 // pred_check
        %p308 = pneg %p307
      $region46: #{tpu_custom_call.1} parent=5 // pred_check_branch
        %310 = sbr.rel (%p308) target = $region48
      $region47: #{tpu_custom_call.1} parent=5 // pred_region
        // Predicated region
        $region49: #{tpu_custom_call.1} parent=47 // pred_check
          %p311 = pneg %p42
        $region50: #{tpu_custom_call.1} parent=47 // pred_check_branch
          %313 = sbr.rel (%p311) target = $region52
        $region51: #{tpu_custom_call.1} parent=47 // pred_region
          %s314 = sand.u32 %s32, 1
          %s315 = scalar_lea.sflag [#allocation3], %s314
          %s316 = sand.u32 %s32, 1
          %s317 = smul.addr %s316, 8
          %s318 = scalar_lea.vmem [#allocation2], %s317
          %s320 = ssub.s32 128, 128
          %321 = vsyncadd %s315, %s320
          %s322 = smul.addr %s22, 128
          %s323 = scalar_lea.hbm %s0, %s322
          %s325 = sshll.u32 %s318, 4
          %s326 = int_to_ptr.vmem [resolvable:$true] %s325
          %328 = dma.hbm_to_vmem [thread:$0]  %s323, 128, %s326, %s315
        $region52: #{tpu_custom_call.1} parent=47 // pred_fallthru
          _
        // Predicated region
        $region53: #{tpu_custom_call.1} parent=47 // pred_check
          %p329 = pneg %p68
        $region54: #{tpu_custom_call.1} parent=47 // pred_check_branch
          %331 = sbr.rel (%p329) target = $region56
        $region55: #{tpu_custom_call.1} parent=47 // pred_region
          %p332 = scmp.lt.s32.totalorder %s22, 1
          %s333 = scalar_select %p332, %s22, 1
          %s334 = smul.addr %s333, 2
          %s335 = smul.addr %s334, 8
          %s336 = scalar_lea.vmem %s1, %s335
        $region56: #{tpu_custom_call.1} parent=47 // pred_fallthru
          _
      $region48: #{tpu_custom_call.1} parent=5 // pred_fallthru
        _
      %p337 = scmp.le.s32.totalorder 1, %s22
      %p338 = scmp.lt.s32.totalorder %s22, 3
      %p339 = pnand %p337, %p338
      %p340 = pneg %p339
      // Predicated region
      $region57: #{tpu_custom_call.1} parent=5 // pred_check
        _
      $region58: #{tpu_custom_call.1} parent=5 // pred_check_branch
        %342 = sbr.rel (%p339) target = $region60
      $region59: #{tpu_custom_call.1} parent=5 // pred_region
        %s343 = ssub.s32 %s22, 1
        %s344 = sand.u32 %s35, 1
        %s345 = scalar_lea.sflag [#allocation3], %s344
        %s346 = sand.u32 %s35, 1
        %s347 = smul.addr %s346, 8
        %s348 = scalar_lea.vmem [#allocation2], %s347
        // Predicated region
        $region61: #{tpu_custom_call.1} parent=59 // pred_check
          %p349 = pneg %p48
        $region62: #{tpu_custom_call.1} parent=59 // pred_check_branch
          %351 = sbr.rel (%p349) target = $region64
        $region63: #{tpu_custom_call.1} parent=59 // pred_region
          %352 = dma.done %s345, 128
        $region64: #{tpu_custom_call.1} parent=59 // pred_fallthru
          _
        %s353 = sand.u32 %s35, 1
        %s354 = scalar_lea.sflag [#allocation3], %s353
        %s355 = sand.u32 %s35, 1
        %s356 = smul.addr %s355, 8
        %s357 = scalar_lea.vmem [#allocation2], %s356
        %p358 = pneg %p48
        %p359 = pneg %p45
        %p360 = scmp.lt.s32.totalorder %s27, 1
        %s361 = scalar_select %p360, %s27, 1
        %s362 = smul.addr %s361, 2
        %s363 = smul.addr %s362, 8
        %s364 = scalar_lea.vmem %s1, %s363
        %p365 = pneg %p74
        %p366 = pneg %p71
        %p367 = pneg %p95
        %p368 = pneg %p92
        %p369 = pneg %p116
        %p370 = pneg %p113
        %p371 = pneg %p137
        %p372 = pneg %p134
        %p373 = pneg %p158
        %p374 = pneg %p155
        %p375 = pneg %p179
        %p376 = pneg %p176
        %p377 = pneg %p200
        %p378 = pneg %p197
        %p379 = pneg %p221
        %p380 = pneg %p218
        %p381 = pneg %p242
        %p382 = pneg %p239
        %p383 = pneg %p268
        %p384 = pneg %p265
        %s385 = sand.u32 %s255, 1
        %s386 = scalar_lea.sflag [#allocation4], %s385
        %s387 = sand.u32 %s255, 1
        %s388 = smul.addr %s387, 8
        %s389 = scalar_lea.vmem [#allocation5], %s388
        %p390 = scmp.lt.s32.totalorder %s27, 1
        %s391 = scalar_select %p390, %s27, 1
        %s392 = smul.addr %s391, 2
        %s393 = smul.addr %s392, 8
        %s394 = scalar_lea.vmem %s1, %s393
        %v395 = vld [vmem:[%s348] sm:$0xff]
        %v396 = vld [vmem:[%s394] sm:$0xff]
        %v397 = vld [vmem:[%s394 + $0x8] sm:$0xff]
        %v398 = vld [vmem:[%s7] sm:$0x1]
        %v399 = vld [vmem:[%s7 + $0x1] sm:$0x1]
        %v400 = vld [vmem:[%s7 + $0x2] sm:$0x1]
        %v401 = vld [vmem:[%s7 + $0x3] sm:$0x1]
        %v402 = vld [vmem:[%s7 + $0x4] sm:$0x1]
        %v403 = vld [vmem:[%s7 + $0x5] sm:$0x1]
        %v404 = vld [vmem:[%s7 + $0x6] sm:$0x1]
        %v405 = vld [vmem:[%s2] sm:$0xff]
        %v406 = vld [vmem:[%s2 + $0x8] sm:$0xff]
        %v407 = vld [vmem:[%s2 + $0x10] sm:$0xff]
        %v408 = vld [vmem:[%s2 + $0x18] sm:$0xff]
        %v409 = vlaneseq
        %v410 = vshrl.u32 %v409, 7
        %v411 = vsub.s32 0, %v410
        %v412 = vrot.slane %v398, %v411
        %vm413 = vcmask 261120
        %v415 = vsel %vm413, %v395, 0
        %417 = vmatprep.subr.mxu0 0.0
        %418 = vmatpush1.msra.mxu0 %v405
        %419 = vmatprep.subr.mxu0 0.0
        %420 = vmatpush1.msra.mxu0 %v406
        %421 = vmatprep.subr.mxu0 0.0
        %422 = vmatpush1.msra.mxu0 %v407
        %423 = vmatprep.subr.mxu0 0.0
        %424 = vmatpush1.msra.mxu0 %v408
        %425 = vmatprep.subr.mxu0 0.0
        %426 = vmatpush1.msra.mxu0 0.0
        %427 = vmatprep.subr.mxu0 0.0
        %428 = vmatpush1.msra.mxu0 0.0
        %429 = vmatprep.subr.mxu0 0.0
        %430 = vmatpush1.msra.mxu0 0.0
        %431 = vmatprep.subr.mxu0 0.0
        %432 = vmatpush1.msra.mxu0 0.0
        %433 = vmatprep.subr.mxu0 0.0
        %434 = vmatpush1.msra.mxu0 0.0
        %435 = vmatprep.subr.mxu0 0.0
        %436 = vmatpush1.msra.mxu0 0.0
        %437 = vmatprep.subr.mxu0 0.0
        %438 = vmatpush1.msra.mxu0 0.0
        %439 = vmatprep.subr.mxu0 0.0
        %440 = vmatpush1.msra.mxu0 0.0
        %441 = vmatprep.subr.mxu0 0.0
        %442 = vmatpush1.msra.mxu0 0.0
        %443 = vmatprep.subr.mxu0 0.0
        %444 = vmatpush1.msra.mxu0 0.0
        %445 = vmatprep.subr.mxu0 0.0
        %446 = vmatpush1.msra.mxu0 0.0
        %447 = vmatprep.subr.mxu0 0.0
        %448 = vmatpush1.msra.mxu0 0.0
        %449 = vmatprep.subr.mxu0 0.0
        %450 = vmatpush1.msra.mxu0 0.0
        %451 = vmatprep.subr.mxu0 0.0
        %452 = vmatpush1.msra.mxu0 0.0
        %453 = vmatprep.subr.mxu0 0.0
        %454 = vmatpush1.msra.mxu0 0.0
        %455 = vmatprep.subr.mxu0 0.0
        %456 = vmatpush1.msra.mxu0 0.0
        %457 = vmatprep.subr.mxu0 0.0
        %458 = vmatpush1.msra.mxu0 0.0
        %459 = vmatprep.subr.mxu0 0.0
        %460 = vmatpush1.msra.mxu0 0.0
        %461 = vmatprep.subr.mxu0 0.0
        %462 = vmatpush1.msra.mxu0 0.0
        %463 = vmatprep.subr.mxu0 0.0
        %464 = vmatpush1.msra.mxu0 0.0
        %465 = vmatprep.subr.mxu0 0.0
        %466 = vmatpush1.msra.mxu0 0.0
        %467 = vmatprep.subr.mxu0 0.0
        %468 = vmatpush1.msra.mxu0 0.0
        %469 = vmatprep.subr.mxu0 0.0
        %470 = vmatpush1.msra.mxu0 0.0
        %471 = vmatprep.subr.mxu0 0.0
        %472 = vmatpush1.msra.mxu0 0.0
        %473 = vmatprep.subr.mxu0 0.0
        %474 = vmatpush1.msra.mxu0 0.0
        %475 = vmatprep.subr.mxu0 0.0
        %476 = vmatpush1.msra.mxu0 0.0
        %477 = vmatprep.subr.mxu0 0.0
        %478 = vmatpush1.msra.mxu0 0.0
        %479 = vmatprep.subr.mxu0 0.0
        %480 = vmatpush1.msra.mxu0 0.0
        %481 = vmatprep.mubr.f32.mxu0 0.0
        %482 = vmatmul.mubr.f32.gmra.mrb[0].mxu0 %v415
        %v483 = vpop.f32.mrb[0].mxu0
        %v484 = vadd.f32 %v412, %v483
        %v485 = vpop.f32.mrb[0].mxu0
        %486 = vdwg.mxu0
        %v487 = vld [vmem:[%s3] sm:$0xff]
        %v488 = vld [vmem:[%s3 + $0x8] sm:$0xff]
        %v489 = vld [vmem:[%s3 + $0x10] sm:$0xff]
        %v490 = vld [vmem:[%s3 + $0x18] sm:$0xff]
        %v491 = vld [vmem:[%s8] sm:$0x1]
        %v493 = vlaneseq
        %v494 = vshrl.u32 %v493, 7
        %v495 = vsub.s32 0, %v494
        %v496 = vrot.slane %v491, %v495
        %v499 = vsel %vm413, %v396, 0
        %v502 = vsel %vm413, %v397, 0
        %504 = vmatprep.subr.mxu0 0.0
        %505 = vmatpush1.msra.mxu0 %v487
        %506 = vmatprep.subr.mxu0 0.0
        %507 = vmatpush1.msra.mxu0 %v488
        %508 = vmatprep.subr.mxu0 0.0
        %509 = vmatpush1.msra.mxu0 %v489
        %510 = vmatprep.subr.mxu0 0.0
        %511 = vmatpush1.msra.mxu0 %v490
        %512 = vmatprep.subr.mxu0 0.0
        %513 = vmatpush1.msra.mxu0 0.0
        %514 = vmatprep.subr.mxu0 0.0
        %515 = vmatpush1.msra.mxu0 0.0
        %516 = vmatprep.subr.mxu0 0.0
        %517 = vmatpush1.msra.mxu0 0.0
        %518 = vmatprep.subr.mxu0 0.0
        %519 = vmatpush1.msra.mxu0 0.0
        %520 = vmatprep.subr.mxu0 0.0
        %521 = vmatpush1.msra.mxu0 0.0
        %522 = vmatprep.subr.mxu0 0.0
        %523 = vmatpush1.msra.mxu0 0.0
        %524 = vmatprep.subr.mxu0 0.0
        %525 = vmatpush1.msra.mxu0 0.0
        %526 = vmatprep.subr.mxu0 0.0
        %527 = vmatpush1.msra.mxu0 0.0
        %528 = vmatprep.subr.mxu0 0.0
        %529 = vmatpush1.msra.mxu0 0.0
        %530 = vmatprep.subr.mxu0 0.0
        %531 = vmatpush1.msra.mxu0 0.0
        %532 = vmatprep.subr.mxu0 0.0
        %533 = vmatpush1.msra.mxu0 0.0
        %534 = vmatprep.subr.mxu0 0.0
        %535 = vmatpush1.msra.mxu0 0.0
        %536 = vmatprep.subr.mxu0 0.0
        %537 = vmatpush1.msra.mxu0 0.0
        %538 = vmatprep.subr.mxu0 0.0
        %539 = vmatpush1.msra.mxu0 0.0
        %540 = vmatprep.subr.mxu0 0.0
        %541 = vmatpush1.msra.mxu0 0.0
        %542 = vmatprep.subr.mxu0 0.0
        %543 = vmatpush1.msra.mxu0 0.0
        %544 = vmatprep.subr.mxu0 0.0
        %545 = vmatpush1.msra.mxu0 0.0
        %546 = vmatprep.subr.mxu0 0.0
        %547 = vmatpush1.msra.mxu0 0.0
        %548 = vmatprep.subr.mxu0 0.0
        %549 = vmatpush1.msra.mxu0 0.0
        %550 = vmatprep.subr.mxu0 0.0
        %551 = vmatpush1.msra.mxu0 0.0
        %552 = vmatprep.subr.mxu0 0.0
        %553 = vmatpush1.msra.mxu0 0.0
        %554 = vmatprep.subr.mxu0 0.0
        %555 = vmatpush1.msra.mxu0 0.0
        %556 = vmatprep.subr.mxu0 0.0
        %557 = vmatpush1.msra.mxu0 0.0
        %558 = vmatprep.subr.mxu0 0.0
        %559 = vmatpush1.msra.mxu0 0.0
        %560 = vmatprep.subr.mxu0 0.0
        %561 = vmatpush1.msra.mxu0 0.0
        %562 = vmatprep.subr.mxu0 0.0
        %563 = vmatpush1.msra.mxu0 0.0
        %564 = vmatprep.subr.mxu0 0.0
        %565 = vmatpush1.msra.mxu0 0.0
        %566 = vmatprep.subr.mxu0 0.0
        %567 = vmatpush1.msra.mxu0 0.0
        %568 = vmatprep.mubr.f32.mxu0 0.0
        %569 = vmatmul.mubr.f32.gmra.mrb[0].mxu0 %v499
        %v570 = vpop.f32.mrb[0].mxu0
        %v571 = vadd.f32 %v496, %v570
        %v572 = vpop.f32.mrb[0].mxu0
        %573 = vmatprep.mubr.f32.mxu0 0.0
        %574 = vmatmul.mubr.f32.gmra.mrb[0].mxu0 %v502
        %v575 = vpop.f32.mrb[0].mxu0
        %v576 = vadd.f32 %v496, %v575
        %v577 = vpop.f32.mrb[0].mxu0
        %578 = vdwg.mxu0
        %vm579 = vcmask 64512
        %v581 = vsel %vm579, %v484, 0
        %v584 = vsel %vm579, %v571, 0
        %v587 = vsel %vm579, %v576, 0
        %589 = vmatprep.subr.mxu0 0.0
        %590 = vmatpush1.xpose.msra.mxu0 %v584
        %591 = vmatprep.subr.mxu0 0.0
        %592 = vmatpush1.xpose.msra.mxu0 %v587
        %593 = vmatprep.subr.mxu0 0.0
        %594 = vmatpush1.xpose.msra.mxu0 0.0
        %595 = vmatprep.subr.mxu0 0.0
        %596 = vmatpush1.xpose.msra.mxu0 0.0
        %597 = vmatprep.subr.mxu0 0.0
        %598 = vmatpush1.xpose.msra.mxu0 0.0
        %599 = vmatprep.subr.mxu0 0.0
        %600 = vmatpush1.xpose.msra.mxu0 0.0
        %601 = vmatprep.subr.mxu0 0.0
        %602 = vmatpush1.xpose.msra.mxu0 0.0
        %603 = vmatprep.subr.mxu0 0.0
        %604 = vmatpush1.xpose.msra.mxu0 0.0
        %605 = vmatprep.subr.mxu0 0.0
        %606 = vmatpush1.xpose.msra.mxu0 0.0
        %607 = vmatprep.subr.mxu0 0.0
        %608 = vmatpush1.xpose.msra.mxu0 0.0
        %609 = vmatprep.subr.mxu0 0.0
        %610 = vmatpush1.xpose.msra.mxu0 0.0
        %611 = vmatprep.subr.mxu0 0.0
        %612 = vmatpush1.xpose.msra.mxu0 0.0
        %613 = vmatprep.subr.mxu0 0.0
        %614 = vmatpush1.xpose.msra.mxu0 0.0
        %615 = vmatprep.subr.mxu0 0.0
        %616 = vmatpush1.xpose.msra.mxu0 0.0
        %617 = vmatprep.subr.mxu0 0.0
        %618 = vmatpush1.xpose.msra.mxu0 0.0
        %619 = vmatprep.subr.mxu0 0.0
        %620 = vmatpush1.xpose.msra.mxu0 0.0
        %621 = vmatprep.subr.mxu0 0.0
        %622 = vmatpush1.xpose.msra.mxu0 0.0
        %623 = vmatprep.subr.mxu0 0.0
        %624 = vmatpush1.xpose.msra.mxu0 0.0
        %625 = vmatprep.subr.mxu0 0.0
        %626 = vmatpush1.xpose.msra.mxu0 0.0
        %627 = vmatprep.subr.mxu0 0.0
        %628 = vmatpush1.xpose.msra.mxu0 0.0
        %629 = vmatprep.subr.mxu0 0.0
        %630 = vmatpush1.xpose.msra.mxu0 0.0
        %631 = vmatprep.subr.mxu0 0.0
        %632 = vmatpush1.xpose.msra.mxu0 0.0
        %633 = vmatprep.subr.mxu0 0.0
        %634 = vmatpush1.xpose.msra.mxu0 0.0
        %635 = vmatprep.subr.mxu0 0.0
        %636 = vmatpush1.xpose.msra.mxu0 0.0
        %637 = vmatprep.subr.mxu0 0.0
        %638 = vmatpush1.xpose.msra.mxu0 0.0
        %639 = vmatprep.subr.mxu0 0.0
        %640 = vmatpush1.xpose.msra.mxu0 0.0
        %641 = vmatprep.subr.mxu0 0.0
        %642 = vmatpush1.xpose.msra.mxu0 0.0
        %643 = vmatprep.subr.mxu0 0.0
        %644 = vmatpush1.xpose.msra.mxu0 0.0
        %645 = vmatprep.subr.mxu0 0.0
        %646 = vmatpush1.xpose.msra.mxu0 0.0
        %647 = vmatprep.subr.mxu0 0.0
        %648 = vmatpush1.xpose.msra.mxu0 0.0
        %649 = vmatprep.subr.mxu0 0.0
        %650 = vmatpush1.xpose.msra.mxu0 0.0
        %651 = vmatprep.subr.mxu0 0.0
        %652 = vmatpush1.xpose.msra.mxu0 0.0
        %653 = vmatprep.mubr.f32.mxu0 0.0
        %654 = vmatmul.mubr.f32.gmra.mrb[0].mxu0 %v581
        %v655 = vpop.f32.mrb[0].mxu0
        %v656 = vadd.f32 0.0, %v655
        %v657 = vpop.f32.mrb[0].mxu0
        %658 = vdwg.mxu0
        %vm659 = vcmask 130048
        %v660 = vsel %vm659, %v656, -inf
        %661 = vmax.xlane.f32.xlu0 %v660
        %v662 = vpop.xlane.xlu0 %661
        %v663 = vsub.f32 %v656, %v662
        %v664 = vmul.f32 %v663, 1.442695
        %v665 = vpow.pop %v664
        %v666 = vsel %vm659, %v665, 0.0
        %667 = vadd.xlane.f32.xlu0 %v666
        %v668 = vpop.xlane.xlu0 %667
        %v669 = vrcp.pop %v668
        %v670 = vmul.f32 %v665, %v669
        %671 = vrot.lane.b32.xlu0 %v571, 96
        %v672 = vpop.permute.xlu0 %671
        %673 = vrot.lane.b32.xlu0 %v576, 96
        %v674 = vpop.permute.xlu0 %673
        %v678 = vsel %vm659, %v670, 0
        %680 = vmatprep.subr.mxu0 0.0
        %681 = vmatpush1.msra.mxu0 %v672
        %682 = vmatprep.subr.mxu0 0.0
        %683 = vmatpush1.msra.mxu0 %v674
        %684 = vmatprep.subr.mxu0 0.0
        %685 = vmatpush1.msra.mxu0 0.0
        %686 = vmatprep.subr.mxu0 0.0
        %687 = vmatpush1.msra.mxu0 0.0
        %688 = vmatprep.subr.mxu0 0.0
        %689 = vmatpush1.msra.mxu0 0.0
        %690 = vmatprep.subr.mxu0 0.0
        %691 = vmatpush1.msra.mxu0 0.0
        %692 = vmatprep.subr.mxu0 0.0
        %693 = vmatpush1.msra.mxu0 0.0
        %694 = vmatprep.subr.mxu0 0.0
        %695 = vmatpush1.msra.mxu0 0.0
        %696 = vmatprep.subr.mxu0 0.0
        %697 = vmatpush1.msra.mxu0 0.0
        %698 = vmatprep.subr.mxu0 0.0
        %699 = vmatpush1.msra.mxu0 0.0
        %700 = vmatprep.subr.mxu0 0.0
        %701 = vmatpush1.msra.mxu0 0.0
        %702 = vmatprep.subr.mxu0 0.0
        %703 = vmatpush1.msra.mxu0 0.0
        %704 = vmatprep.subr.mxu0 0.0
        %705 = vmatpush1.msra.mxu0 0.0
        %706 = vmatprep.subr.mxu0 0.0
        %707 = vmatpush1.msra.mxu0 0.0
        %708 = vmatprep.subr.mxu0 0.0
        %709 = vmatpush1.msra.mxu0 0.0
        %710 = vmatprep.subr.mxu0 0.0
        %711 = vmatpush1.msra.mxu0 0.0
        %712 = vmatprep.subr.mxu0 0.0
        %713 = vmatpush1.msra.mxu0 0.0
        %714 = vmatprep.subr.mxu0 0.0
        %715 = vmatpush1.msra.mxu0 0.0
        %716 = vmatprep.subr.mxu0 0.0
        %717 = vmatpush1.msra.mxu0 0.0
        %718 = vmatprep.subr.mxu0 0.0
        %719 = vmatpush1.msra.mxu0 0.0
        %720 = vmatprep.subr.mxu0 0.0
        %721 = vmatpush1.msra.mxu0 0.0
        %722 = vmatprep.subr.mxu0 0.0
        %723 = vmatpush1.msra.mxu0 0.0
        %724 = vmatprep.subr.mxu0 0.0
        %725 = vmatpush1.msra.mxu0 0.0
        %726 = vmatprep.subr.mxu0 0.0
        %727 = vmatpush1.msra.mxu0 0.0
        %728 = vmatprep.subr.mxu0 0.0
        %729 = vmatpush1.msra.mxu0 0.0
        %730 = vmatprep.subr.mxu0 0.0
        %731 = vmatpush1.msra.mxu0 0.0
        %732 = vmatprep.subr.mxu0 0.0
        %733 = vmatpush1.msra.mxu0 0.0
        %734 = vmatprep.subr.mxu0 0.0
        %735 = vmatpush1.msra.mxu0 0.0
        %736 = vmatprep.subr.mxu0 0.0
        %737 = vmatpush1.msra.mxu0 0.0
        %738 = vmatprep.subr.mxu0 0.0
        %739 = vmatpush1.msra.mxu0 0.0
        %740 = vmatprep.subr.mxu0 0.0
        %741 = vmatpush1.msra.mxu0 0.0
        %742 = vmatprep.subr.mxu0 0.0
        %743 = vmatpush1.msra.mxu0 0.0
        %744 = vmatprep.mubr.f32.mxu0 0.0
        %745 = vmatmul.mubr.f32.gmra.mrb[0].mxu0 %v678
        %v746 = vpop.f32.mrb[0].mxu0
        %v747 = vadd.f32 0.0, %v746
        %v748 = vpop.f32.mrb[0].mxu0
        %749 = vdwg.mxu0
        %750 = vrot.lane.b32.xlu0 %v484, 120
        %v751 = vpop.permute.xlu0 %750
        %752 = vrot.lane.b32.xlu0 %v571, 120
        %v753 = vpop.permute.xlu0 %752
        %754 = vrot.lane.b32.xlu0 %v576, 120
        %v755 = vpop.permute.xlu0 %754
        %v756 = vsel %vm579, %v751, 0
        %v758 = vsel %vm579, %v753, 0
        %v760 = vsel %vm579, %v755, 0
        %762 = vmatprep.subr.mxu0 0.0
        %763 = vmatpush1.xpose.msra.mxu0 %v758
        %764 = vmatprep.subr.mxu0 0.0
        %765 = vmatpush1.xpose.msra.mxu0 %v760
        %766 = vmatprep.subr.mxu0 0.0
        %767 = vmatpush1.xpose.msra.mxu0 0.0
        %768 = vmatprep.subr.mxu0 0.0
        %769 = vmatpush1.xpose.msra.mxu0 0.0
        %770 = vmatprep.subr.mxu0 0.0
        %771 = vmatpush1.xpose.msra.mxu0 0.0
        %772 = vmatprep.subr.mxu0 0.0
        %773 = vmatpush1.xpose.msra.mxu0 0.0
        %774 = vmatprep.subr.mxu0 0.0
        %775 = vmatpush1.xpose.msra.mxu0 0.0
        %776 = vmatprep.subr.mxu0 0.0
        %777 = vmatpush1.xpose.msra.mxu0 0.0
        %778 = vmatprep.subr.mxu0 0.0
        %779 = vmatpush1.xpose.msra.mxu0 0.0
        %780 = vmatprep.subr.mxu0 0.0
        %781 = vmatpush1.xpose.msra.mxu0 0.0
        %782 = vmatprep.subr.mxu0 0.0
        %783 = vmatpush1.xpose.msra.mxu0 0.0
        %784 = vmatprep.subr.mxu0 0.0
        %785 = vmatpush1.xpose.msra.mxu0 0.0
        %786 = vmatprep.subr.mxu0 0.0
        %787 = vmatpush1.xpose.msra.mxu0 0.0
        %788 = vmatprep.subr.mxu0 0.0
        %789 = vmatpush1.xpose.msra.mxu0 0.0
        %790 = vmatprep.subr.mxu0 0.0
        %791 = vmatpush1.xpose.msra.mxu0 0.0
        %792 = vmatprep.subr.mxu0 0.0
        %793 = vmatpush1.xpose.msra.mxu0 0.0
        %794 = vmatprep.subr.mxu0 0.0
        %795 = vmatpush1.xpose.msra.mxu0 0.0
        %796 = vmatprep.subr.mxu0 0.0
        %797 = vmatpush1.xpose.msra.mxu0 0.0
        %798 = vmatprep.subr.mxu0 0.0
        %799 = vmatpush1.xpose.msra.mxu0 0.0
        %800 = vmatprep.subr.mxu0 0.0
        %801 = vmatpush1.xpose.msra.mxu0 0.0
        %802 = vmatprep.subr.mxu0 0.0
        %803 = vmatpush1.xpose.msra.mxu0 0.0
        %804 = vmatprep.subr.mxu0 0.0
        %805 = vmatpush1.xpose.msra.mxu0 0.0
        %806 = vmatprep.subr.mxu0 0.0
        %807 = vmatpush1.xpose.msra.mxu0 0.0
        %808 = vmatprep.subr.mxu0 0.0
        %809 = vmatpush1.xpose.msra.mxu0 0.0
        %810 = vmatprep.subr.mxu0 0.0
        %811 = vmatpush1.xpose.msra.mxu0 0.0
        %812 = vmatprep.subr.mxu0 0.0
        %813 = vmatpush1.xpose.msra.mxu0 0.0
        %814 = vmatprep.subr.mxu0 0.0
        %815 = vmatpush1.xpose.msra.mxu0 0.0
        %816 = vmatprep.subr.mxu0 0.0
        %817 = vmatpush1.xpose.msra.mxu0 0.0
        %818 = vmatprep.subr.mxu0 0.0
        %819 = vmatpush1.xpose.msra.mxu0 0.0
        %820 = vmatprep.subr.mxu0 0.0
        %821 = vmatpush1.xpose.msra.mxu0 0.0
        %822 = vmatprep.subr.mxu0 0.0
        %823 = vmatpush1.xpose.msra.mxu0 0.0
        %824 = vmatprep.subr.mxu0 0.0
        %825 = vmatpush1.xpose.msra.mxu0 0.0
        %826 = vmatprep.mubr.f32.mxu0 0.0
        %827 = vmatmul.mubr.f32.gmra.mrb[0].mxu0 %v756
        %v828 = vpop.f32.mrb[0].mxu0
        %v829 = vadd.f32 0.0, %v828
        %v830 = vpop.f32.mrb[0].mxu0
        %831 = vdwg.mxu0
        %v832 = vsel %vm659, %v829, -inf
        %833 = vmax.xlane.f32.xlu0 %v832
        %v834 = vpop.xlane.xlu0 %833
        %v835 = vsub.f32 %v829, %v834
        %v836 = vmul.f32 %v835, 1.442695
        %v837 = vpow.pop %v836
        %v838 = vsel %vm659, %v837, 0.0
        %839 = vadd.xlane.f32.xlu0 %v838
        %v840 = vpop.xlane.xlu0 %839
        %v841 = vrcp.pop %v840
        %v842 = vmul.f32 %v837, %v841
        %843 = vrot.lane.b32.xlu0 %v571, 88
        %v844 = vpop.permute.xlu0 %843
        %845 = vrot.lane.b32.xlu0 %v576, 88
        %v846 = vpop.permute.xlu0 %845
        %v850 = vsel %vm659, %v842, 0
        %852 = vmatprep.subr.mxu0 0.0
        %853 = vmatpush1.msra.mxu0 %v844
        %854 = vmatprep.subr.mxu0 0.0
        %855 = vmatpush1.msra.mxu0 %v846
        %856 = vmatprep.subr.mxu0 0.0
        %857 = vmatpush1.msra.mxu0 0.0
        %858 = vmatprep.subr.mxu0 0.0
        %859 = vmatpush1.msra.mxu0 0.0
        %860 = vmatprep.subr.mxu0 0.0
        %861 = vmatpush1.msra.mxu0 0.0
        %862 = vmatprep.subr.mxu0 0.0
        %863 = vmatpush1.msra.mxu0 0.0
        %864 = vmatprep.subr.mxu0 0.0
        %865 = vmatpush1.msra.mxu0 0.0
        %866 = vmatprep.subr.mxu0 0.0
        %867 = vmatpush1.msra.mxu0 0.0
        %868 = vmatprep.subr.mxu0 0.0
        %869 = vmatpush1.msra.mxu0 0.0
        %870 = vmatprep.subr.mxu0 0.0
        %871 = vmatpush1.msra.mxu0 0.0
        %872 = vmatprep.subr.mxu0 0.0
        %873 = vmatpush1.msra.mxu0 0.0
        %874 = vmatprep.subr.mxu0 0.0
        %875 = vmatpush1.msra.mxu0 0.0
        %876 = vmatprep.subr.mxu0 0.0
        %877 = vmatpush1.msra.mxu0 0.0
        %878 = vmatprep.subr.mxu0 0.0
        %879 = vmatpush1.msra.mxu0 0.0
        %880 = vmatprep.subr.mxu0 0.0
        %881 = vmatpush1.msra.mxu0 0.0
        %882 = vmatprep.subr.mxu0 0.0
        %883 = vmatpush1.msra.mxu0 0.0
        %884 = vmatprep.subr.mxu0 0.0
        %885 = vmatpush1.msra.mxu0 0.0
        %886 = vmatprep.subr.mxu0 0.0
        %887 = vmatpush1.msra.mxu0 0.0
        %888 = vmatprep.subr.mxu0 0.0
        %889 = vmatpush1.msra.mxu0 0.0
        %890 = vmatprep.subr.mxu0 0.0
        %891 = vmatpush1.msra.mxu0 0.0
        %892 = vmatprep.subr.mxu0 0.0
        %893 = vmatpush1.msra.mxu0 0.0
        %894 = vmatprep.subr.mxu0 0.0
        %895 = vmatpush1.msra.mxu0 0.0
        %896 = vmatprep.subr.mxu0 0.0
        %897 = vmatpush1.msra.mxu0 0.0
        %898 = vmatprep.subr.mxu0 0.0
        %899 = vmatpush1.msra.mxu0 0.0
        %900 = vmatprep.subr.mxu0 0.0
        %901 = vmatpush1.msra.mxu0 0.0
        %902 = vmatprep.subr.mxu0 0.0
        %903 = vmatpush1.msra.mxu0 0.0
        %904 = vmatprep.subr.mxu0 0.0
        %905 = vmatpush1.msra.mxu0 0.0
        %906 = vmatprep.subr.mxu0 0.0
        %907 = vmatpush1.msra.mxu0 0.0
        %908 = vmatprep.subr.mxu0 0.0
        %909 = vmatpush1.msra.mxu0 0.0
        %910 = vmatprep.subr.mxu0 0.0
        %911 = vmatpush1.msra.mxu0 0.0
        %912 = vmatprep.subr.mxu0 0.0
        %913 = vmatpush1.msra.mxu0 0.0
        %914 = vmatprep.subr.mxu0 0.0
        %915 = vmatpush1.msra.mxu0 0.0
        %916 = vmatprep.mubr.f32.mxu0 0.0
        %917 = vmatmul.mubr.f32.gmra.mrb[0].mxu0 %v850
        %v918 = vpop.f32.mrb[0].mxu0
        %v919 = vadd.f32 0.0, %v918
        %v920 = vpop.f32.mrb[0].mxu0
        %921 = vdwg.mxu0
        %922 = vrot.lane.b32.xlu0 %v484, 112
        %v923 = vpop.permute.xlu0 %922
        %924 = vrot.lane.b32.xlu0 %v571, 112
        %v925 = vpop.permute.xlu0 %924
        %926 = vrot.lane.b32.xlu0 %v576, 112
        %v927 = vpop.permute.xlu0 %926
        %v928 = vsel %vm579, %v923, 0
        %v930 = vsel %vm579, %v925, 0
        %v932 = vsel %vm579, %v927, 0
        %934 = vmatprep.subr.mxu0 0.0
        %935 = vmatpush1.xpose.msra.mxu0 %v930
        %936 = vmatprep.subr.mxu0 0.0
        %937 = vmatpush1.xpose.msra.mxu0 %v932
        %938 = vmatprep.subr.mxu0 0.0
        %939 = vmatpush1.xpose.msra.mxu0 0.0
        %940 = vmatprep.subr.mxu0 0.0
        %941 = vmatpush1.xpose.msra.mxu0 0.0
        %942 = vmatprep.subr.mxu0 0.0
        %943 = vmatpush1.xpose.msra.mxu0 0.0
        %944 = vmatprep.subr.mxu0 0.0
        %945 = vmatpush1.xpose.msra.mxu0 0.0
        %946 = vmatprep.subr.mxu0 0.0
        %947 = vmatpush1.xpose.msra.mxu0 0.0
        %948 = vmatprep.subr.mxu0 0.0
        %949 = vmatpush1.xpose.msra.mxu0 0.0
        %950 = vmatprep.subr.mxu0 0.0
        %951 = vmatpush1.xpose.msra.mxu0 0.0
        %952 = vmatprep.subr.mxu0 0.0
        %953 = vmatpush1.xpose.msra.mxu0 0.0
        %954 = vmatprep.subr.mxu0 0.0
        %955 = vmatpush1.xpose.msra.mxu0 0.0
        %956 = vmatprep.subr.mxu0 0.0
        %957 = vmatpush1.xpose.msra.mxu0 0.0
        %958 = vmatprep.subr.mxu0 0.0
        %959 = vmatpush1.xpose.msra.mxu0 0.0
        %960 = vmatprep.subr.mxu0 0.0
        %961 = vmatpush1.xpose.msra.mxu0 0.0
        %962 = vmatprep.subr.mxu0 0.0
        %963 = vmatpush1.xpose.msra.mxu0 0.0
        %964 = vmatprep.subr.mxu0 0.0
        %965 = vmatpush1.xpose.msra.mxu0 0.0
        %966 = vmatprep.subr.mxu0 0.0
        %967 = vmatpush1.xpose.msra.mxu0 0.0
        %968 = vmatprep.subr.mxu0 0.0
        %969 = vmatpush1.xpose.msra.mxu0 0.0
        %970 = vmatprep.subr.mxu0 0.0
        %971 = vmatpush1.xpose.msra.mxu0 0.0
        %972 = vmatprep.subr.mxu0 0.0
        %973 = vmatpush1.xpose.msra.mxu0 0.0
        %974 = vmatprep.subr.mxu0 0.0
        %975 = vmatpush1.xpose.msra.mxu0 0.0
        %976 = vmatprep.subr.mxu0 0.0
        %977 = vmatpush1.xpose.msra.mxu0 0.0
        %978 = vmatprep.subr.mxu0 0.0
        %979 = vmatpush1.xpose.msra.mxu0 0.0
        %980 = vmatprep.subr.mxu0 0.0
        %981 = vmatpush1.xpose.msra.mxu0 0.0
        %982 = vmatprep.subr.mxu0 0.0
        %983 = vmatpush1.xpose.msra.mxu0 0.0
        %984 = vmatprep.subr.mxu0 0.0
        %985 = vmatpush1.xpose.msra.mxu0 0.0
        %986 = vmatprep.subr.mxu0 0.0
        %987 = vmatpush1.xpose.msra.mxu0 0.0
        %988 = vmatprep.subr.mxu0 0.0
        %989 = vmatpush1.xpose.msra.mxu0 0.0
        %990 = vmatprep.subr.mxu0 0.0
        %991 = vmatpush1.xpose.msra.mxu0 0.0
        %992 = vmatprep.subr.mxu0 0.0
        %993 = vmatpush1.xpose.msra.mxu0 0.0
        %994 = vmatprep.subr.mxu0 0.0
        %995 = vmatpush1.xpose.msra.mxu0 0.0
        %996 = vmatprep.subr.mxu0 0.0
        %997 = vmatpush1.xpose.msra.mxu0 0.0
        %998 = vmatprep.mubr.f32.mxu0 0.0
        %999 = vmatmul.mubr.f32.gmra.mrb[0].mxu0 %v928
        %v1000 = vpop.f32.mrb[0].mxu0
        %v1001 = vadd.f32 0.0, %v1000
        %v1002 = vpop.f32.mrb[0].mxu0
        %1003 = vdwg.mxu0
        %v1004 = vsel %vm659, %v1001, -inf
        %1005 = vmax.xlane.f32.xlu0 %v1004
        %v1006 = vpop.xlane.xlu0 %1005
        %v1007 = vsub.f32 %v1001, %v1006
        %v1008 = vmul.f32 %v1007, 1.442695
        %v1009 = vpow.pop %v1008
        %v1010 = vsel %vm659, %v1009, 0.0
        %1011 = vadd.xlane.f32.xlu0 %v1010
        %v1012 = vpop.xlane.xlu0 %1011
        %v1013 = vrcp.pop %v1012
        %v1014 = vmul.f32 %v1009, %v1013
        %1015 = vrot.lane.b32.xlu0 %v571, 80
        %v1016 = vpop.permute.xlu0 %1015
        %1017 = vrot.lane.b32.xlu0 %v576, 80
        %v1018 = vpop.permute.xlu0 %1017
        %v1022 = vsel %vm659, %v1014, 0
        %1024 = vmatprep.subr.mxu0 0.0
        %1025 = vmatpush1.msra.mxu0 %v1016
        %1026 = vmatprep.subr.mxu0 0.0
        %1027 = vmatpush1.msra.mxu0 %v1018
        %1028 = vmatprep.subr.mxu0 0.0
        %1029 = vmatpush1.msra.mxu0 0.0
        %1030 = vmatprep.subr.mxu0 0.0
        %1031 = vmatpush1.msra.mxu0 0.0
        %1032 = vmatprep.subr.mxu0 0.0
        %1033 = vmatpush1.msra.mxu0 0.0
        %1034 = vmatprep.subr.mxu0 0.0
        %1035 = vmatpush1.msra.mxu0 0.0
        %1036 = vmatprep.subr.mxu0 0.0
        %1037 = vmatpush1.msra.mxu0 0.0
        %1038 = vmatprep.subr.mxu0 0.0
        %1039 = vmatpush1.msra.mxu0 0.0
        %1040 = vmatprep.subr.mxu0 0.0
        %1041 = vmatpush1.msra.mxu0 0.0
        %1042 = vmatprep.subr.mxu0 0.0
        %1043 = vmatpush1.msra.mxu0 0.0
        %1044 = vmatprep.subr.mxu0 0.0
        %1045 = vmatpush1.msra.mxu0 0.0
        %1046 = vmatprep.subr.mxu0 0.0
        %1047 = vmatpush1.msra.mxu0 0.0
        %1048 = vmatprep.subr.mxu0 0.0
        %1049 = vmatpush1.msra.mxu0 0.0
        %1050 = vmatprep.subr.mxu0 0.0
        %1051 = vmatpush1.msra.mxu0 0.0
        %1052 = vmatprep.subr.mxu0 0.0
        %1053 = vmatpush1.msra.mxu0 0.0
        %1054 = vmatprep.subr.mxu0 0.0
        %1055 = vmatpush1.msra.mxu0 0.0
        %1056 = vmatprep.subr.mxu0 0.0
        %1057 = vmatpush1.msra.mxu0 0.0
        %1058 = vmatprep.subr.mxu0 0.0
        %1059 = vmatpush1.msra.mxu0 0.0
        %1060 = vmatprep.subr.mxu0 0.0
        %1061 = vmatpush1.msra.mxu0 0.0
        %1062 = vmatprep.subr.mxu0 0.0
        %1063 = vmatpush1.msra.mxu0 0.0
        %1064 = vmatprep.subr.mxu0 0.0
        %1065 = vmatpush1.msra.mxu0 0.0
        %1066 = vmatprep.subr.mxu0 0.0
        %1067 = vmatpush1.msra.mxu0 0.0
        %1068 = vmatprep.subr.mxu0 0.0
        %1069 = vmatpush1.msra.mxu0 0.0
        %1070 = vmatprep.subr.mxu0 0.0
        %1071 = vmatpush1.msra.mxu0 0.0
        %1072 = vmatprep.subr.mxu0 0.0
        %1073 = vmatpush1.msra.mxu0 0.0
        %1074 = vmatprep.subr.mxu0 0.0
        %1075 = vmatpush1.msra.mxu0 0.0
        %1076 = vmatprep.subr.mxu0 0.0
        %1077 = vmatpush1.msra.mxu0 0.0
        %1078 = vmatprep.subr.mxu0 0.0
        %1079 = vmatpush1.msra.mxu0 0.0
        %1080 = vmatprep.subr.mxu0 0.0
        %1081 = vmatpush1.msra.mxu0 0.0
        %1082 = vmatprep.subr.mxu0 0.0
        %1083 = vmatpush1.msra.mxu0 0.0
        %1084 = vmatprep.subr.mxu0 0.0
        %1085 = vmatpush1.msra.mxu0 0.0
        %1086 = vmatprep.subr.mxu0 0.0
        %1087 = vmatpush1.msra.mxu0 0.0
        %1088 = vmatprep.mubr.f32.mxu0 0.0
        %1089 = vmatmul.mubr.f32.gmra.mrb[0].mxu0 %v1022
        %v1090 = vpop.f32.mrb[0].mxu0
        %v1091 = vadd.f32 0.0, %v1090
        %v1092 = vpop.f32.mrb[0].mxu0
        %1093 = vdwg.mxu0
        %1094 = vrot.lane.b32.xlu0 %v484, 104
        %v1095 = vpop.permute.xlu0 %1094
        %1096 = vrot.lane.b32.xlu0 %v571, 104
        %v1097 = vpop.permute.xlu0 %1096
        %1098 = vrot.lane.b32.xlu0 %v576, 104
        %v1099 = vpop.permute.xlu0 %1098
        %v1100 = vsel %vm579, %v1095, 0
        %v1102 = vsel %vm579, %v1097, 0
        %v1104 = vsel %vm579, %v1099, 0
        %1106 = vmatprep.subr.mxu0 0.0
        %1107 = vmatpush1.xpose.msra.mxu0 %v1102
        %1108 = vmatprep.subr.mxu0 0.0
        %1109 = vmatpush1.xpose.msra.mxu0 %v1104
        %1110 = vmatprep.subr.mxu0 0.0
        %1111 = vmatpush1.xpose.msra.mxu0 0.0
        %1112 = vmatprep.subr.mxu0 0.0
        %1113 = vmatpush1.xpose.msra.mxu0 0.0
        %1114 = vmatprep.subr.mxu0 0.0
        %1115 = vmatpush1.xpose.msra.mxu0 0.0
        %1116 = vmatprep.subr.mxu0 0.0
        %1117 = vmatpush1.xpose.msra.mxu0 0.0
        %1118 = vmatprep.subr.mxu0 0.0
        %1119 = vmatpush1.xpose.msra.mxu0 0.0
        %1120 = vmatprep.subr.mxu0 0.0
        %1121 = vmatpush1.xpose.msra.mxu0 0.0
        %1122 = vmatprep.subr.mxu0 0.0
        %1123 = vmatpush1.xpose.msra.mxu0 0.0
        %1124 = vmatprep.subr.mxu0 0.0
        %1125 = vmatpush1.xpose.msra.mxu0 0.0
        %1126 = vmatprep.subr.mxu0 0.0
        %1127 = vmatpush1.xpose.msra.mxu0 0.0
        %1128 = vmatprep.subr.mxu0 0.0
        %1129 = vmatpush1.xpose.msra.mxu0 0.0
        %1130 = vmatprep.subr.mxu0 0.0
        %1131 = vmatpush1.xpose.msra.mxu0 0.0
        %1132 = vmatprep.subr.mxu0 0.0
        %1133 = vmatpush1.xpose.msra.mxu0 0.0
        %1134 = vmatprep.subr.mxu0 0.0
        %1135 = vmatpush1.xpose.msra.mxu0 0.0
        %1136 = vmatprep.subr.mxu0 0.0
        %1137 = vmatpush1.xpose.msra.mxu0 0.0
        %1138 = vmatprep.subr.mxu0 0.0
        %1139 = vmatpush1.xpose.msra.mxu0 0.0
        %1140 = vmatprep.subr.mxu0 0.0
        %1141 = vmatpush1.xpose.msra.mxu0 0.0
        %1142 = vmatprep.subr.mxu0 0.0
        %1143 = vmatpush1.xpose.msra.mxu0 0.0
        %1144 = vmatprep.subr.mxu0 0.0
        %1145 = vmatpush1.xpose.msra.mxu0 0.0
        %1146 = vmatprep.subr.mxu0 0.0
        %1147 = vmatpush1.xpose.msra.mxu0 0.0
        %1148 = vmatprep.subr.mxu0 0.0
        %1149 = vmatpush1.xpose.msra.mxu0 0.0
        %1150 = vmatprep.subr.mxu0 0.0
        %1151 = vmatpush1.xpose.msra.mxu0 0.0
        %1152 = vmatprep.subr.mxu0 0.0
        %1153 = vmatpush1.xpose.msra.mxu0 0.0
        %1154 = vmatprep.subr.mxu0 0.0
        %1155 = vmatpush1.xpose.msra.mxu0 0.0
        %1156 = vmatprep.subr.mxu0 0.0
        %1157 = vmatpush1.xpose.msra.mxu0 0.0
        %1158 = vmatprep.subr.mxu0 0.0
        %1159 = vmatpush1.xpose.msra.mxu0 0.0
        %1160 = vmatprep.subr.mxu0 0.0
        %1161 = vmatpush1.xpose.msra.mxu0 0.0
        %1162 = vmatprep.subr.mxu0 0.0
        %1163 = vmatpush1.xpose.msra.mxu0 0.0
        %1164 = vmatprep.subr.mxu0 0.0
        %1165 = vmatpush1.xpose.msra.mxu0 0.0
        %1166 = vmatprep.subr.mxu0 0.0
        %1167 = vmatpush1.xpose.msra.mxu0 0.0
        %1168 = vmatprep.subr.mxu0 0.0
        %1169 = vmatpush1.xpose.msra.mxu0 0.0
        %1170 = vmatprep.mubr.f32.mxu0 0.0
        %1171 = vmatmul.mubr.f32.gmra.mrb[0].mxu0 %v1100
        %v1172 = vpop.f32.mrb[0].mxu0
        %v1173 = vadd.f32 0.0, %v1172
        %v1174 = vpop.f32.mrb[0].mxu0
        %1175 = vdwg.mxu0
        %v1176 = vsel %vm659, %v1173, -inf
        %1177 = vmax.xlane.f32.xlu0 %v1176
        %v1178 = vpop.xlane.xlu0 %1177
        %v1179 = vsub.f32 %v1173, %v1178
        %v1180 = vmul.f32 %v1179, 1.442695
        %v1181 = vpow.pop %v1180
        %v1182 = vsel %vm659, %v1181, 0.0
        %1183 = vadd.xlane.f32.xlu0 %v1182
        %v1184 = vpop.xlane.xlu0 %1183
        %v1185 = vrcp.pop %v1184
        %v1186 = vmul.f32 %v1181, %v1185
        %1187 = vrot.lane.b32.xlu0 %v571, 72
        %v1188 = vpop.permute.xlu0 %1187
        %1189 = vrot.lane.b32.xlu0 %v576, 72
        %v1190 = vpop.permute.xlu0 %1189
        %v1194 = vsel %vm659, %v1186, 0
        %1196 = vmatprep.subr.mxu0 0.0
        %1197 = vmatpush1.msra.mxu0 %v1188
        %1198 = vmatprep.subr.mxu0 0.0
        %1199 = vmatpush1.msra.mxu0 %v1190
        %1200 = vmatprep.subr.mxu0 0.0
        %1201 = vmatpush1.msra.mxu0 0.0
        %1202 = vmatprep.subr.mxu0 0.0
        %1203 = vmatpush1.msra.mxu0 0.0
        %1204 = vmatprep.subr.mxu0 0.0
        %1205 = vmatpush1.msra.mxu0 0.0
        %1206 = vmatprep.subr.mxu0 0.0
        %1207 = vmatpush1.msra.mxu0 0.0
        %1208 = vmatprep.subr.mxu0 0.0
        %1209 = vmatpush1.msra.mxu0 0.0
        %1210 = vmatprep.subr.mxu0 0.0
        %1211 = vmatpush1.msra.mxu0 0.0
        %1212 = vmatprep.subr.mxu0 0.0
        %1213 = vmatpush1.msra.mxu0 0.0
        %1214 = vmatprep.subr.mxu0 0.0
        %1215 = vmatpush1.msra.mxu0 0.0
        %1216 = vmatprep.subr.mxu0 0.0
        %1217 = vmatpush1.msra.mxu0 0.0
        %1218 = vmatprep.subr.mxu0 0.0
        %1219 = vmatpush1.msra.mxu0 0.0
        %1220 = vmatprep.subr.mxu0 0.0
        %1221 = vmatpush1.msra.mxu0 0.0
        %1222 = vmatprep.subr.mxu0 0.0
        %1223 = vmatpush1.msra.mxu0 0.0
        %1224 = vmatprep.subr.mxu0 0.0
        %1225 = vmatpush1.msra.mxu0 0.0
        %1226 = vmatprep.subr.mxu0 0.0
        %1227 = vmatpush1.msra.mxu0 0.0
        %1228 = vmatprep.subr.mxu0 0.0
        %1229 = vmatpush1.msra.mxu0 0.0
        %1230 = vmatprep.subr.mxu0 0.0
        %1231 = vmatpush1.msra.mxu0 0.0
        %1232 = vmatprep.subr.mxu0 0.0
        %1233 = vmatpush1.msra.mxu0 0.0
        %1234 = vmatprep.subr.mxu0 0.0
        %1235 = vmatpush1.msra.mxu0 0.0
        %1236 = vmatprep.subr.mxu0 0.0
        %1237 = vmatpush1.msra.mxu0 0.0
        %1238 = vmatprep.subr.mxu0 0.0
        %1239 = vmatpush1.msra.mxu0 0.0
        %1240 = vmatprep.subr.mxu0 0.0
        %1241 = vmatpush1.msra.mxu0 0.0
        %1242 = vmatprep.subr.mxu0 0.0
        %1243 = vmatpush1.msra.mxu0 0.0
        %1244 = vmatprep.subr.mxu0 0.0
        %1245 = vmatpush1.msra.mxu0 0.0
        %1246 = vmatprep.subr.mxu0 0.0
        %1247 = vmatpush1.msra.mxu0 0.0
        %1248 = vmatprep.subr.mxu0 0.0
        %1249 = vmatpush1.msra.mxu0 0.0
        %1250 = vmatprep.subr.mxu0 0.0
        %1251 = vmatpush1.msra.mxu0 0.0
        %1252 = vmatprep.subr.mxu0 0.0
        %1253 = vmatpush1.msra.mxu0 0.0
        %1254 = vmatprep.subr.mxu0 0.0
        %1255 = vmatpush1.msra.mxu0 0.0
        %1256 = vmatprep.subr.mxu0 0.0
        %1257 = vmatpush1.msra.mxu0 0.0
        %1258 = vmatprep.subr.mxu0 0.0
        %1259 = vmatpush1.msra.mxu0 0.0
        %1260 = vmatprep.mubr.f32.mxu0 0.0
        %1261 = vmatmul.mubr.f32.gmra.mrb[0].mxu0 %v1194
        %v1262 = vpop.f32.mrb[0].mxu0
        %v1263 = vadd.f32 0.0, %v1262
        %v1264 = vpop.f32.mrb[0].mxu0
        %1265 = vdwg.mxu0
        %1267 = vrot.lane.b32.xlu0 %v919, 8
        %v1268 = vpop.permute.xlu0 %1267
        %1271 = vrot.lane.b32.xlu0 %v1091, 16
        %v1272 = vpop.permute.xlu0 %1271
        %1275 = vrot.lane.b32.xlu0 %v1263, 24
        %v1276 = vpop.permute.xlu0 %1275
        %v1278 = vsel %vm579, %v747, %v1268
        %v1279 = vsel %vm659, %v1278, %v1272
        %vm1280 = vcmask 195584
        %v1281 = vsel %vm1280, %v1279, %v1276
        %v1282 = vld [vmem:[%s4] sm:$0xff]
        %v1283 = vld [vmem:[%s4 + $0x8] sm:$0xff]
        %v1284 = vld [vmem:[%s4 + $0x10] sm:$0xff]
        %v1285 = vld [vmem:[%s4 + $0x18] sm:$0xff]
        %v1286 = vlaneseq
        %v1287 = vshrl.u32 %v1286, 7
        %v1288 = vsub.s32 0, %v1287
        %v1289 = vrot.slane %v399, %v1288
        %v1291 = vsel %vm413, %v1281, 0
        %1293 = vmatprep.subr.mxu0 0.0
        %1294 = vmatpush1.msra.mxu0 %v1282
        %1295 = vmatprep.subr.mxu0 0.0
        %1296 = vmatpush1.msra.mxu0 %v1283
        %1297 = vmatprep.subr.mxu0 0.0
        %1298 = vmatpush1.msra.mxu0 %v1284
        %1299 = vmatprep.subr.mxu0 0.0
        %1300 = vmatpush1.msra.mxu0 %v1285
        %1301 = vmatprep.subr.mxu0 0.0
        %1302 = vmatpush1.msra.mxu0 0.0
        %1303 = vmatprep.subr.mxu0 0.0
        %1304 = vmatpush1.msra.mxu0 0.0
        %1305 = vmatprep.subr.mxu0 0.0
        %1306 = vmatpush1.msra.mxu0 0.0
        %1307 = vmatprep.subr.mxu0 0.0
        %1308 = vmatpush1.msra.mxu0 0.0
        %1309 = vmatprep.subr.mxu0 0.0
        %1310 = vmatpush1.msra.mxu0 0.0
        %1311 = vmatprep.subr.mxu0 0.0
        %1312 = vmatpush1.msra.mxu0 0.0
        %1313 = vmatprep.subr.mxu0 0.0
        %1314 = vmatpush1.msra.mxu0 0.0
        %1315 = vmatprep.subr.mxu0 0.0
        %1316 = vmatpush1.msra.mxu0 0.0
        %1317 = vmatprep.subr.mxu0 0.0
        %1318 = vmatpush1.msra.mxu0 0.0
        %1319 = vmatprep.subr.mxu0 0.0
        %1320 = vmatpush1.msra.mxu0 0.0
        %1321 = vmatprep.subr.mxu0 0.0
        %1322 = vmatpush1.msra.mxu0 0.0
        %1323 = vmatprep.subr.mxu0 0.0
        %1324 = vmatpush1.msra.mxu0 0.0
        %1325 = vmatprep.subr.mxu0 0.0
        %1326 = vmatpush1.msra.mxu0 0.0
        %1327 = vmatprep.subr.mxu0 0.0
        %1328 = vmatpush1.msra.mxu0 0.0
        %1329 = vmatprep.subr.mxu0 0.0
        %1330 = vmatpush1.msra.mxu0 0.0
        %1331 = vmatprep.subr.mxu0 0.0
        %1332 = vmatpush1.msra.mxu0 0.0
        %1333 = vmatprep.subr.mxu0 0.0
        %1334 = vmatpush1.msra.mxu0 0.0
        %1335 = vmatprep.subr.mxu0 0.0
        %1336 = vmatpush1.msra.mxu0 0.0
        %1337 = vmatprep.subr.mxu0 0.0
        %1338 = vmatpush1.msra.mxu0 0.0
        %1339 = vmatprep.subr.mxu0 0.0
        %1340 = vmatpush1.msra.mxu0 0.0
        %1341 = vmatprep.subr.mxu0 0.0
        %1342 = vmatpush1.msra.mxu0 0.0
        %1343 = vmatprep.subr.mxu0 0.0
        %1344 = vmatpush1.msra.mxu0 0.0
        %1345 = vmatprep.subr.mxu0 0.0
        %1346 = vmatpush1.msra.mxu0 0.0
        %1347 = vmatprep.subr.mxu0 0.0
        %1348 = vmatpush1.msra.mxu0 0.0
        %1349 = vmatprep.subr.mxu0 0.0
        %1350 = vmatpush1.msra.mxu0 0.0
        %1351 = vmatprep.subr.mxu0 0.0
        %1352 = vmatpush1.msra.mxu0 0.0
        %1353 = vmatprep.subr.mxu0 0.0
        %1354 = vmatpush1.msra.mxu0 0.0
        %1355 = vmatprep.subr.mxu0 0.0
        %1356 = vmatpush1.msra.mxu0 0.0
        %1357 = vmatprep.mubr.f32.mxu0 0.0
        %1358 = vmatmul.mubr.f32.gmra.mrb[0].mxu0 %v1291
        %v1359 = vpop.f32.mrb[0].mxu0
        %v1360 = vadd.f32 %v1289, %v1359
        %v1361 = vpop.f32.mrb[0].mxu0
        %1362 = vdwg.mxu0
        %v1363 = vadd.f32 %v395, %v1360
        %v1364 = vsel %vm413, %v1363, 0.0
        %1365 = vadd.xlane.f32.xlu0 %v1364
        %v1366 = vpop.xlane.xlu0 %1365
        %v1367 = vrcp.pop 32.0
        %v1368 = vmul.f32 %v1366, %v1367
        %v1369 = vsub.f32 %v1363, %v1368
        %v1370 = vmul.f32 %v1369, %v1369
        %v1371 = vsel %vm413, %v1370, 0.0
        %1372 = vadd.xlane.f32.xlu0 %v1371
        %v1373 = vpop.xlane.xlu0 %1372
        %v1374 = vmul.f32 %v1373, %v1367
        %v1375 = vadd.f32 %v1374, 1e-05
        %v1376 = vrsqrt.pop %v1375
        %v1377 = vmul.f32 %v1369, %v1376
        %v1378 = vlaneseq
        %v1379 = vshrl.u32 %v1378, 7
        %v1380 = vsub.s32 0, %v1379
        %v1381 = vrot.slane %v400, %v1380
        %v1382 = vmul.f32 %v1377, %v1381
        %v1383 = vlaneseq
        %v1384 = vshrl.u32 %v1383, 7
        %v1385 = vsub.s32 0, %v1384
        %v1386 = vrot.slane %v401, %v1385
        %v1387 = vadd.f32 %v1382, %v1386
        %v1388 = vld [vmem:[%s5] sm:$0xff]
        %v1389 = vld [vmem:[%s5 + $0x8] sm:$0xff]
        %v1390 = vld [vmem:[%s5 + $0x10] sm:$0xff]
        %v1391 = vld [vmem:[%s5 + $0x18] sm:$0xff]
        %v1392 = vld [vmem:[%s9] sm:$0x1]
        %v1394 = vlaneseq
        %v1395 = vshrl.u32 %v1394, 7
        %v1396 = vsub.s32 0, %v1395
        %v1397 = vrot.slane %v1392, %v1396
        %v1400 = vsel %vm413, %v1387, 0
        %1402 = vmatprep.subr.mxu0 0.0
        %1403 = vmatpush1.msra.mxu0 %v1388
        %1404 = vmatprep.subr.mxu0 0.0
        %1405 = vmatpush1.msra.mxu0 %v1389
        %1406 = vmatprep.subr.mxu0 0.0
        %1407 = vmatpush1.msra.mxu0 %v1390
        %1408 = vmatprep.subr.mxu0 0.0
        %1409 = vmatpush1.msra.mxu0 %v1391
        %1410 = vmatprep.subr.mxu0 0.0
        %1411 = vmatpush1.msra.mxu0 0.0
        %1412 = vmatprep.subr.mxu0 0.0
        %1413 = vmatpush1.msra.mxu0 0.0
        %1414 = vmatprep.subr.mxu0 0.0
        %1415 = vmatpush1.msra.mxu0 0.0
        %1416 = vmatprep.subr.mxu0 0.0
        %1417 = vmatpush1.msra.mxu0 0.0
        %1418 = vmatprep.subr.mxu0 0.0
        %1419 = vmatpush1.msra.mxu0 0.0
        %1420 = vmatprep.subr.mxu0 0.0
        %1421 = vmatpush1.msra.mxu0 0.0
        %1422 = vmatprep.subr.mxu0 0.0
        %1423 = vmatpush1.msra.mxu0 0.0
        %1424 = vmatprep.subr.mxu0 0.0
        %1425 = vmatpush1.msra.mxu0 0.0
        %1426 = vmatprep.subr.mxu0 0.0
        %1427 = vmatpush1.msra.mxu0 0.0
        %1428 = vmatprep.subr.mxu0 0.0
        %1429 = vmatpush1.msra.mxu0 0.0
        %1430 = vmatprep.subr.mxu0 0.0
        %1431 = vmatpush1.msra.mxu0 0.0
        %1432 = vmatprep.subr.mxu0 0.0
        %1433 = vmatpush1.msra.mxu0 0.0
        %1434 = vmatprep.subr.mxu0 0.0
        %1435 = vmatpush1.msra.mxu0 0.0
        %1436 = vmatprep.subr.mxu0 0.0
        %1437 = vmatpush1.msra.mxu0 0.0
        %1438 = vmatprep.subr.mxu0 0.0
        %1439 = vmatpush1.msra.mxu0 0.0
        %1440 = vmatprep.subr.mxu0 0.0
        %1441 = vmatpush1.msra.mxu0 0.0
        %1442 = vmatprep.subr.mxu0 0.0
        %1443 = vmatpush1.msra.mxu0 0.0
        %1444 = vmatprep.subr.mxu0 0.0
        %1445 = vmatpush1.msra.mxu0 0.0
        %1446 = vmatprep.subr.mxu0 0.0
        %1447 = vmatpush1.msra.mxu0 0.0
        %1448 = vmatprep.subr.mxu0 0.0
        %1449 = vmatpush1.msra.mxu0 0.0
        %1450 = vmatprep.subr.mxu0 0.0
        %1451 = vmatpush1.msra.mxu0 0.0
        %1452 = vmatprep.subr.mxu0 0.0
        %1453 = vmatpush1.msra.mxu0 0.0
        %1454 = vmatprep.subr.mxu0 0.0
        %1455 = vmatpush1.msra.mxu0 0.0
        %1456 = vmatprep.subr.mxu0 0.0
        %1457 = vmatpush1.msra.mxu0 0.0
        %1458 = vmatprep.subr.mxu0 0.0
        %1459 = vmatpush1.msra.mxu0 0.0
        %1460 = vmatprep.subr.mxu0 0.0
        %1461 = vmatpush1.msra.mxu0 0.0
        %1462 = vmatprep.subr.mxu0 0.0
        %1463 = vmatpush1.msra.mxu0 0.0
        %1464 = vmatprep.subr.mxu0 0.0
        %1465 = vmatpush1.msra.mxu0 0.0
        %1466 = vmatprep.mubr.f32.mxu0 0.0
        %1467 = vmatmul.mubr.f32.gmra.mrb[0].mxu0 %v1400
        %v1468 = vpop.f32.mrb[0].mxu0
        %v1469 = vadd.f32 %v1397, %v1468
        %v1470 = vpop.f32.mrb[0].mxu0
        %1471 = vdwg.mxu0
        %v1472 = vmax.f32 %v1469, 0.0
        %v1473 = vld [vmem:[%s6] sm:$0xff]
        %v1474 = vld [vmem:[%s6 + $0x8] sm:$0xff]
        %v1475 = vld [vmem:[%s6 + $0x10] sm:$0xff]
        %v1476 = vld [vmem:[%s6 + $0x18] sm:$0xff]
        %v1477 = vld [vmem:[%s6 + $0x20] sm:$0xff]
        %v1478 = vld [vmem:[%s6 + $0x28] sm:$0xff]
        %v1479 = vld [vmem:[%s6 + $0x30] sm:$0xff]
        %v1480 = vld [vmem:[%s6 + $0x38] sm:$0xff]
        %v1481 = vld [vmem:[%s6 + $0x40] sm:$0xff]
        %v1482 = vld [vmem:[%s6 + $0x48] sm:$0xff]
        %v1483 = vld [vmem:[%s6 + $0x50] sm:$0xff]
        %v1484 = vld [vmem:[%s6 + $0x58] sm:$0xff]
        %v1485 = vld [vmem:[%s6 + $0x60] sm:$0xff]
        %v1486 = vld [vmem:[%s6 + $0x68] sm:$0xff]
        %v1487 = vld [vmem:[%s6 + $0x70] sm:$0xff]
        %v1488 = vld [vmem:[%s6 + $0x78] sm:$0xff]
        %v1489 = vlaneseq
        %v1490 = vshrl.u32 %v1489, 7
        %v1491 = vsub.s32 0, %v1490
        %v1492 = vrot.slane %v402, %v1491
        %1493 = vmatprep.subr.mxu0 0.0
        %1494 = vmatpush1.msra.mxu0 %v1473
        %1495 = vmatprep.subr.mxu0 0.0
        %1496 = vmatpush1.msra.mxu0 %v1474
        %1497 = vmatprep.subr.mxu0 0.0
        %1498 = vmatpush1.msra.mxu0 %v1475
        %1499 = vmatprep.subr.mxu0 0.0
        %1500 = vmatpush1.msra.mxu0 %v1476
        %1501 = vmatprep.subr.mxu0 0.0
        %1502 = vmatpush1.msra.mxu0 %v1477
        %1503 = vmatprep.subr.mxu0 0.0
        %1504 = vmatpush1.msra.mxu0 %v1478
        %1505 = vmatprep.subr.mxu0 0.0
        %1506 = vmatpush1.msra.mxu0 %v1479
        %1507 = vmatprep.subr.mxu0 0.0
        %1508 = vmatpush1.msra.mxu0 %v1480
        %1509 = vmatprep.subr.mxu0 0.0
        %1510 = vmatpush1.msra.mxu0 %v1481
        %1511 = vmatprep.subr.mxu0 0.0
        %1512 = vmatpush1.msra.mxu0 %v1482
        %1513 = vmatprep.subr.mxu0 0.0
        %1514 = vmatpush1.msra.mxu0 %v1483
        %1515 = vmatprep.subr.mxu0 0.0
        %1516 = vmatpush1.msra.mxu0 %v1484
        %1517 = vmatprep.subr.mxu0 0.0
        %1518 = vmatpush1.msra.mxu0 %v1485
        %1519 = vmatprep.subr.mxu0 0.0
        %1520 = vmatpush1.msra.mxu0 %v1486
        %1521 = vmatprep.subr.mxu0 0.0
        %1522 = vmatpush1.msra.mxu0 %v1487
        %1523 = vmatprep.subr.mxu0 0.0
        %1524 = vmatpush1.msra.mxu0 %v1488
        %1525 = vmatprep.subr.mxu0 0.0
        %1526 = vmatpush1.msra.mxu0 0.0
        %1527 = vmatprep.subr.mxu0 0.0
        %1528 = vmatpush1.msra.mxu0 0.0
        %1529 = vmatprep.subr.mxu0 0.0
        %1530 = vmatpush1.msra.mxu0 0.0
        %1531 = vmatprep.subr.mxu0 0.0
        %1532 = vmatpush1.msra.mxu0 0.0
        %1533 = vmatprep.subr.mxu0 0.0
        %1534 = vmatpush1.msra.mxu0 0.0
        %1535 = vmatprep.subr.mxu0 0.0
        %1536 = vmatpush1.msra.mxu0 0.0
        %1537 = vmatprep.subr.mxu0 0.0
        %1538 = vmatpush1.msra.mxu0 0.0
        %1539 = vmatprep.subr.mxu0 0.0
        %1540 = vmatpush1.msra.mxu0 0.0
        %1541 = vmatprep.subr.mxu0 0.0
        %1542 = vmatpush1.msra.mxu0 0.0
        %1543 = vmatprep.subr.mxu0 0.0
        %1544 = vmatpush1.msra.mxu0 0.0
        %1545 = vmatprep.subr.mxu0 0.0
        %1546 = vmatpush1.msra.mxu0 0.0
        %1547 = vmatprep.subr.mxu0 0.0
        %1548 = vmatpush1.msra.mxu0 0.0
        %1549 = vmatprep.subr.mxu0 0.0
        %1550 = vmatpush1.msra.mxu0 0.0
        %1551 = vmatprep.subr.mxu0 0.0
        %1552 = vmatpush1.msra.mxu0 0.0
        %1553 = vmatprep.subr.mxu0 0.0
        %1554 = vmatpush1.msra.mxu0 0.0
        %1555 = vmatprep.subr.mxu0 0.0
        %1556 = vmatpush1.msra.mxu0 0.0
        %1557 = vmatprep.mubr.f32.mxu0 0.0
        %1558 = vmatmul.mubr.f32.gmra.mrb[0].mxu0 %v1472
        %v1559 = vpop.f32.mrb[0].mxu0
        %v1560 = vadd.f32 %v1492, %v1559
        %v1561 = vpop.f32.mrb[0].mxu0
        %1562 = vdwg.mxu0
        %v1563 = vadd.f32 %v1387, %v1560
        %v1564 = vsel %vm413, %v1563, 0.0
        %1565 = vadd.xlane.f32.xlu0 %v1564
        %v1566 = vpop.xlane.xlu0 %1565
        %v1567 = vmul.f32 %v1566, %v1367
        %v1568 = vsub.f32 %v1563, %v1567
        %v1569 = vmul.f32 %v1568, %v1568
        %v1570 = vsel %vm413, %v1569, 0.0
        %1571 = vadd.xlane.f32.xlu0 %v1570
        %v1572 = vpop.xlane.xlu0 %1571
        %v1573 = vmul.f32 %v1572, %v1367
        %v1574 = vadd.f32 %v1573, 1e-05
        %v1575 = vrsqrt.pop %v1574
        %v1576 = vmul.f32 %v1568, %v1575
        %v1577 = vlaneseq
        %v1578 = vshrl.u32 %v1577, 7
        %v1579 = vsub.s32 0, %v1578
        %v1580 = vrot.slane %v403, %v1579
        %v1581 = vmul.f32 %v1576, %v1580
        %v1582 = vlaneseq
        %v1583 = vshrl.u32 %v1582, 7
        %v1584 = vsub.s32 0, %v1583
        %v1585 = vrot.slane %v404, %v1584
        %v1586 = vadd.f32 %v1581, %v1585
        %1587 = vst.msk [vmem:[%s389] sm:$0xff] %vm413, %v1586
        %s1588 = sand.u32 %s255, 1
        %s1589 = scalar_lea.sflag [#allocation4], %s1588
        %s1590 = sand.u32 %s255, 1
        %s1591 = smul.addr %s1590, 8
        %s1592 = scalar_lea.vmem [#allocation5], %s1591
        // Predicated region
        $region65: #{tpu_custom_call.1} parent=59 // pred_check
          %p1593 = pneg %p265
        $region66: #{tpu_custom_call.1} parent=59 // pred_check_branch
          %1595 = sbr.rel (%p1593) target = $region68
        $region67: #{tpu_custom_call.1} parent=59 // pred_region
          %s1597 = ssub.s32 128, 128
          %1598 = vsyncadd %s1589, %s1597
          %s1599 = smul.addr %s27, 128
          %s1600 = scalar_lea.hbm %s10, %s1599
          %s1602 = sshll.u32 %s1592, 4
          %s1603 = int_to_ptr.vmem [resolvable:$true] %s1602
          %1605 = dma.vmem_to_hbm [thread:$0]  %s1603, 128, %s1600, %s1589
        $region68: #{tpu_custom_call.1} parent=59 // pred_fallthru
          _
      $region60: #{tpu_custom_call.1} parent=5 // pred_fallthru
        _
      %p1606 = scmp.le.s32.totalorder 2, %s22
      // Predicated region
      $region69: #{tpu_custom_call.1} parent=5 // pred_check
        %p1607 = pneg %p1606
      $region70: #{tpu_custom_call.1} parent=5 // pred_check_branch
        %1609 = sbr.rel (%p1607) target = $region72
      $region71: #{tpu_custom_call.1} parent=5 // pred_region
        %s1610 = ssub.s32 %s22, 2
        // Predicated region
        $region73: #{tpu_custom_call.1} parent=71 // pred_check
          %p1611 = pneg %p271
        $region74: #{tpu_custom_call.1} parent=71 // pred_check_branch
          %1613 = sbr.rel (%p1611) target = $region76
        $region75: #{tpu_custom_call.1} parent=71 // pred_region
          %s1614 = sand.u32 %s256, 1
          %s1615 = scalar_lea.sflag [#allocation4], %s1614
          %s1616 = sand.u32 %s256, 1
          %s1617 = smul.addr %s1616, 8
          %s1618 = scalar_lea.vmem [#allocation5], %s1617
          %1619 = dma.done %s1615, 128
        $region76: #{tpu_custom_call.1} parent=71 // pred_fallthru
          _
      $region72: #{tpu_custom_call.1} parent=5 // pred_fallthru
        _
    $region6: #{tpu_custom_call.1} parent=1 // loop_footer
      %s26 = sadd.s32 1, %s22
    $region7: #{tpu_custom_call.1} parent=1 // loop_footer_branch
      %21 = sbr.rel target = $region3
    $region8: #{tpu_custom_call.1} parent=1 // loop_exit
      _
    %1620 = vsyncpa [#allocation3], 1
    %s1621 = scalar_lea.sflag [#allocation3], 1
    %1622 = vsyncpa %s1621, 1
    %1623 = vsyncpa [#allocation4], 1
    %s1624 = scalar_lea.sflag [#allocation4], 1
    %1625 = vsyncpa %s1624, 1

</llo_original>
